<compile_context>
chip_gen: v7x
topology: tpu7x:2x2x1
jax: 0.10.0
libtpu: 0.0.40
codegen_flags: <defaults>
</compile_context>

<pallas_src>
import functools

import jax
import jax.numpy as jnp
from jax.experimental import pallas as pl
from jax.experimental.pallas import tpu as pltpu


def textcnn_kernel(x_ref, wall_ref, ball_ref, wfc_ref, bfc_ref, out_ref, *,
                   seq_len):
    # x_ref:    (TB*S, E)     bf16  embedded tokens, batch-major flattened
    # wall_ref: (E, 12*O)     bf16  all conv taps [w3_0..2 | w4_0..3 | w5_0..4]
    # ball_ref: (1, 3*O)      f32   conv biases   [b3 | b4 | b5]
    # wfc_ref:  (3*O, Lpad)   f32   FC weight, lane-padded to 128-multiple
    # bfc_ref:  (1, Lpad)     f32   FC bias, lane-padded
    # out_ref:  (TB, Lpad)    f32   lane-dense logits block
    S = seq_len
    TB = out_ref.shape[0]
    Oc = ball_ref.shape[1] // 3
    n_taps = wall_ref.shape[1] // Oc          # 12 = 3 + 4 + 5

    # One wide MXU matmul replaces the 12 per-tap (small-M) matmuls.
    y = jnp.dot(x_ref[...], wall_ref[...], preferred_element_type=jnp.float32)
    y = y.reshape(TB, S, n_taps * Oc)         # aligned retile (S multiple of 8)

    def branch(tap_base, bias_idx, K):
        # Conv1d(E->O, kernel=K, valid) + global max over length + bias + ReLU,
        # built from shifted sublane adds of the wide-matmul result:
        #   acc[b, l, o] = sum_k Y[b, l+k, (tap_base+k)*O + o]
        L = S - K + 1
        acc = y[:, 0:L, tap_base * Oc:(tap_base + 1) * Oc]
        for k in range(1, K):
            c = (tap_base + k) * Oc
            acc = acc + y[:, k:k + L, c:c + Oc]
        pooled = jnp.max(acc, axis=1)                       # (TB, O)
        b = ball_ref[:, bias_idx * Oc:(bias_idx + 1) * Oc]  # (1, O)
        # max_l relu(a_l + b) == relu(max_l(a_l) + b): epilogue on (TB, O) only.
        return jnp.maximum(pooled + b, 0.0)

    p3 = branch(0, 0, 3)
    p4 = branch(3, 1, 4)
    p5 = branch(7, 2, 5)
    feat = jnp.concatenate([p3, p4, p5], axis=-1)            # (TB, 3*O)

    out = jnp.dot(feat, wfc_ref[...], preferred_element_type=jnp.float32)
    out_ref[...] = out + bfc_ref[...]


def _pick_batch_tile(B, S, Oc):
    # Batch tile must be a multiple of 8 (sublane rule) or cover the full
    # batch, and the f32 wide-matmul temporary (TB, S, 12*Oc) must stay well
    # inside VMEM (budget ~8 MiB) alongside the resident weights.
    budget = 8 * 1024 * 1024
    cap = max(8, budget // (S * 12 * Oc * 4))
    for tb in (64, 32, 16, 8):
        if tb <= cap and B % tb == 0:
            return tb
    return B


def textcnn_forward(tokens, emb_table, w3, b3, w4, b4, w5, b5, wfc, bfc):
    """TextCNN forward. Weights are in PyTorch layout:
       tokens: (S, B) int; w{3,4,5}: (O=256, E, K); b{3,4,5}: (O,);
       wfc: (label, 3*O); bfc: (label,)."""
    S, B = tokens.shape                       # PyTorch input is (seq, batch)
    E = emb_table.shape[1]
    Oc = w3.shape[0]
    label = wfc.shape[0]
    label_pad = 128 * pl.cdiv(label, 128)
    assert S % 8 == 0, "seq_len must be a multiple of 8 for the aligned retile"

    # Embedding lookup in bf16 (halves gather bytes), batch-major (B*S, E).
    idx = tokens.T.reshape(-1)                                # (B*S,)
    x_flat = emb_table.astype(jnp.bfloat16)[idx]              # (B*S, E) bf16

    def taps(w):
        # (O, E, K) torch Conv1d layout -> (E, K*O) with [e, k*O + o] = w[o,e,k]
        O_, E_, K = w.shape
        return jnp.transpose(w, (1, 2, 0)).reshape(E_, K * O_)

    # All 12 conv taps concatenated along the output axis -> (E, 12*O), bf16.
    w_all = jnp.concatenate([taps(w3), taps(w4), taps(w5)],
                            axis=-1).astype(jnp.bfloat16)
    b_all = jnp.concatenate([b3, b4, b5]).reshape(1, 3 * Oc).astype(jnp.float32)

    # Lane-dense FC: pad the label dim to a multiple of 128 with zero columns.
    wfc_pad = jnp.zeros((3 * Oc, label_pad), jnp.float32).at[:, :label].set(
        wfc.T.astype(jnp.float32))
    bfc_pad = jnp.zeros((1, label_pad), jnp.float32).at[:, :label].set(
        bfc.reshape(1, -1).astype(jnp.float32))

    TB = _pick_batch_tile(B, S, Oc)
    grid = (B // TB,)

    def const(shape):
        nd = len(shape)
        return pl.BlockSpec(shape, lambda i, _nd=nd: (0,) * _nd)

    out_pad = pl.pallas_call(
        functools.partial(textcnn_kernel, seq_len=S),
        out_shape=jax.ShapeDtypeStruct((B, label_pad), jnp.float32),
        grid=grid,
        in_specs=[pl.BlockSpec((TB * S, E), lambda i: (i, 0)),
                  const(w_all.shape), const(b_all.shape),
                  const(wfc_pad.shape), const(bfc_pad.shape)],
        out_specs=pl.BlockSpec((TB, label_pad), lambda i: (i, 0)),
        compiler_params=pltpu.CompilerParams(
            dimension_semantics=("parallel",)),
    )(x_flat, w_all, b_all, wfc_pad, bfc_pad)

    return out_pad[:, :label]


def textcnn_reference(tokens, emb_table, w3, b3, w4, b4, w5, b5, wfc, bfc):
    # Pure-JAX reference mirroring the PyTorch module. Conv operands are
    # rounded to bf16 to match the kernel's MXU operand precision (bf16 x bf16
    # products are exact in f32); all arithmetic is f32.
    x = jnp.transpose(emb_table[tokens], (1, 0, 2)).astype(jnp.float32)  # (B,S,E)
    xq = x.astype(jnp.bfloat16).astype(jnp.float32)
    B, S, E = x.shape

    def branch(w, b):                         # w: (O, E, K) torch layout
        wq = w.astype(jnp.bfloat16).astype(jnp.float32)
        O_, _, K = w.shape
        L = S - K + 1
        acc = jnp.zeros((B, L, O_), jnp.float32)
        for k in range(K):
            acc = acc + jnp.einsum('ble,oe->blo', xq[:, k:k + L, :], wq[:, :, k])
        h = jnp.maximum(acc + b[None, None, :], 0.0)
        return jnp.max(h, axis=1)

    feat = jnp.concatenate([branch(w3, b3), branch(w4, b4), branch(w5, b5)],
                           axis=-1)
    return feat @ wfc.T + bfc[None, :]


if __name__ == "__main__":
    # Small, module-consistent shapes.
    VOCAB = 100     # config.WordVocabSize
    E = 128         # config.WordVectorsDim
    O = 256         # conv output channels (fixed by the module)
    S = 16          # sequence length
    B = 4           # batch
    LABEL = 8       # config.Label[config.UseLabel]

    key = jax.random.PRNGKey(0)
    ks = jax.random.split(key, 10)

    tokens = jax.random.randint(ks[0], (S, B), 0, VOCAB)      # (seq, batch)
    emb_table = jax.random.normal(ks[1], (VOCAB, E), jnp.float32) * 0.1
    # PyTorch layouts: Conv1d weight (out, in, kernel), Linear weight (out, in).
    w3 = jax.random.normal(ks[2], (O, E, 3), jnp.float32) * 0.05
    b3 = jax.random.normal(ks[3], (O,), jnp.float32) * 0.05
    w4 = jax.random.normal(ks[4], (O, E, 4), jnp.float32) * 0.05
    b4 = jax.random.normal(ks[5], (O,), jnp.float32) * 0.05
    w5 = jax.random.normal(ks[6], (O, E, 5), jnp.float32) * 0.05
    b5 = jax.random.normal(ks[7], (O,), jnp.float32) * 0.05
    wfc = jax.random.normal(ks[8], (LABEL, 3 * O), jnp.float32) * 0.05
    bfc = jax.random.normal(ks[9], (LABEL,), jnp.float32) * 0.05

    out = textcnn_forward(tokens, emb_table, w3, b3, w4, b4, w5, b5, wfc, bfc)
    out = jax.block_until_ready(out)

    ref = textcnn_reference(tokens, emb_table, w3, b3, w4, b4, w5, b5, wfc, bfc)
    assert out.shape == (B, LABEL)
    assert jnp.allclose(out, ref, atol=2e-3, rtol=2e-3), "mismatch vs reference"

    print("KERNEL_OK")
</pallas_src>

<mosaic_0001>
module attributes {stable_mosaic.version = 11 : i64} {
  func.func @textcnn_kernel(%arg0: i32, %arg1: memref<64x128xbf16, #tpu.memory_space<vmem>>, %arg2: memref<128x3072xbf16, #tpu.memory_space<vmem>>, %arg3: memref<1x768xf32, #tpu.memory_space<vmem>>, %arg4: memref<768x128xf32, #tpu.memory_space<vmem>>, %arg5: memref<1x128xf32, #tpu.memory_space<vmem>>, %arg6: memref<4x128xf32, #tpu.memory_space<vmem>>) attributes {dimension_semantics = [#tpu.dimension_semantics<parallel>], iteration_bounds = array<i64: 1>, scalar_prefetch = 0 : i64, scratch_operands = 0 : i64, tpu.core_type = #tpu.core_type<tc>, window_params = [{transform_indices = @transform_0, window_bounds = array<i64: 64, 128>}, {pipeline_mode = #tpu.pipeline_mode<synchronous>, transform_indices = @transform_1, window_bounds = array<i64: 128, 3072>}, {pipeline_mode = #tpu.pipeline_mode<synchronous>, transform_indices = @transform_2, window_bounds = array<i64: 1, 768>}, {pipeline_mode = #tpu.pipeline_mode<synchronous>, transform_indices = @transform_3, window_bounds = array<i64: 768, 128>}, {pipeline_mode = #tpu.pipeline_mode<synchronous>, transform_indices = @transform_4, window_bounds = array<i64: 1, 128>}, {transform_indices = @transform_5, window_bounds = array<i64: 4, 128>}]} {
    %c0 = arith.constant 0 : index
    %c0_0 = arith.constant 0 : index
    %0 = vector.load %arg1[%c0, %c0_0] : memref<64x128xbf16, #tpu.memory_space<vmem>>, vector<64x128xbf16>
    %c0_1 = arith.constant 0 : index
    %c0_2 = arith.constant 0 : index
    %1 = vector.load %arg2[%c0_1, %c0_2] : memref<128x3072xbf16, #tpu.memory_space<vmem>>, vector<128x3072xbf16>
    %cst = arith.constant dense<0.000000e+00> : vector<64x3072xf32>
    %2 = tpu.matmul %0, %1, %cst {dimension_numbers = #tpu.dot_dimension_numbers<[1], [0], [0], [1], [0, 0, 1, 1], [], []>} : vector<64x128xbf16>, vector<128x3072xbf16>, vector<64x3072xf32> -> vector<64x3072xf32>
    %3 = vector.shape_cast %2 : vector<64x3072xf32> to vector<4x16x3072xf32>
    %4 = vector.extract_strided_slice %3 {offsets = [0, 0, 0], sizes = [4, 14, 256], strides = [1, 1, 1]} : vector<4x16x3072xf32> to vector<4x14x256xf32>
    %5 = vector.extract_strided_slice %3 {offsets = [0, 1, 256], sizes = [4, 14, 256], strides = [1, 1, 1]} : vector<4x16x3072xf32> to vector<4x14x256xf32>
    %6 = arith.addf %4, %5 : vector<4x14x256xf32>
    %7 = vector.extract_strided_slice %3 {offsets = [0, 2, 512], sizes = [4, 14, 256], strides = [1, 1, 1]} : vector<4x16x3072xf32> to vector<4x14x256xf32>
    %8 = arith.addf %6, %7 : vector<4x14x256xf32>
    %cst_3 = arith.constant dense<0xFF800000> : vector<4x256xf32>
    %9 = vector.multi_reduction <maximumf>, %8, %cst_3 [1] : vector<4x14x256xf32> to vector<4x256xf32>
    %c0_4 = arith.constant 0 : index
    %c0_5 = arith.constant 0 : index
    %10 = vector.load %arg3[%c0_4, %c0_5] : memref<1x768xf32, #tpu.memory_space<vmem>>, vector<1x256xf32>
    %11 = vector.broadcast %10 : vector<1x256xf32> to vector<4x256xf32>
    %12 = arith.addf %9, %11 : vector<4x256xf32>
    %cst_6 = arith.constant 0.000000e+00 : f32
    %13 = vector.broadcast %cst_6 : f32 to vector<4x256xf32>
    %14 = arith.maximumf %12, %13 : vector<4x256xf32>
    %15 = vector.extract_strided_slice %3 {offsets = [0, 0, 768], sizes = [4, 13, 256], strides = [1, 1, 1]} : vector<4x16x3072xf32> to vector<4x13x256xf32>
    %16 = vector.extract_strided_slice %3 {offsets = [0, 1, 1024], sizes = [4, 13, 256], strides = [1, 1, 1]} : vector<4x16x3072xf32> to vector<4x13x256xf32>
    %17 = arith.addf %15, %16 : vector<4x13x256xf32>
    %18 = vector.extract_strided_slice %3 {offsets = [0, 2, 1280], sizes = [4, 13, 256], strides = [1, 1, 1]} : vector<4x16x3072xf32> to vector<4x13x256xf32>
    %19 = arith.addf %17, %18 : vector<4x13x256xf32>
    %20 = vector.extract_strided_slice %3 {offsets = [0, 3, 1536], sizes = [4, 13, 256], strides = [1, 1, 1]} : vector<4x16x3072xf32> to vector<4x13x256xf32>
    %21 = arith.addf %19, %20 : vector<4x13x256xf32>
    %cst_7 = arith.constant dense<0xFF800000> : vector<4x256xf32>
    %22 = vector.multi_reduction <maximumf>, %21, %cst_7 [1] : vector<4x13x256xf32> to vector<4x256xf32>
    %c0_8 = arith.constant 0 : index
    %c256 = arith.constant 256 : index
    %23 = vector.load %arg3[%c0_8, %c256] : memref<1x768xf32, #tpu.memory_space<vmem>>, vector<1x256xf32>
    %24 = vector.broadcast %23 : vector<1x256xf32> to vector<4x256xf32>
    %25 = arith.addf %22, %24 : vector<4x256xf32>
    %cst_9 = arith.constant 0.000000e+00 : f32
    %26 = vector.broadcast %cst_9 : f32 to vector<4x256xf32>
    %27 = arith.maximumf %25, %26 : vector<4x256xf32>
    %28 = vector.extract_strided_slice %3 {offsets = [0, 0, 1792], sizes = [4, 12, 256], strides = [1, 1, 1]} : vector<4x16x3072xf32> to vector<4x12x256xf32>
    %29 = vector.extract_strided_slice %3 {offsets = [0, 1, 2048], sizes = [4, 12, 256], strides = [1, 1, 1]} : vector<4x16x3072xf32> to vector<4x12x256xf32>
    %30 = arith.addf %28, %29 : vector<4x12x256xf32>
    %31 = vector.extract_strided_slice %3 {offsets = [0, 2, 2304], sizes = [4, 12, 256], strides = [1, 1, 1]} : vector<4x16x3072xf32> to vector<4x12x256xf32>
    %32 = arith.addf %30, %31 : vector<4x12x256xf32>
    %33 = vector.extract_strided_slice %3 {offsets = [0, 3, 2560], sizes = [4, 12, 256], strides = [1, 1, 1]} : vector<4x16x3072xf32> to vector<4x12x256xf32>
    %34 = arith.addf %32, %33 : vector<4x12x256xf32>
    %35 = vector.extract_strided_slice %3 {offsets = [0, 4, 2816], sizes = [4, 12, 256], strides = [1, 1, 1]} : vector<4x16x3072xf32> to vector<4x12x256xf32>
    %36 = arith.addf %34, %35 : vector<4x12x256xf32>
    %cst_10 = arith.constant dense<0xFF800000> : vector<4x256xf32>
    %37 = vector.multi_reduction <maximumf>, %36, %cst_10 [1] : vector<4x12x256xf32> to vector<4x256xf32>
    %c0_11 = arith.constant 0 : index
    %c512 = arith.constant 512 : index
    %38 = vector.load %arg3[%c0_11, %c512] : memref<1x768xf32, #tpu.memory_space<vmem>>, vector<1x256xf32>
    %39 = vector.broadcast %38 : vector<1x256xf32> to vector<4x256xf32>
    %40 = arith.addf %37, %39 : vector<4x256xf32>
    %cst_12 = arith.constant 0.000000e+00 : f32
    %41 = vector.broadcast %cst_12 : f32 to vector<4x256xf32>
    %42 = arith.maximumf %40, %41 : vector<4x256xf32>
    %43 = tpu.concatenate %14, %27, %42 in 1 : vector<4x256xf32>, vector<4x256xf32>, vector<4x256xf32> -> vector<4x768xf32>
    %c0_13 = arith.constant 0 : index
    %c0_14 = arith.constant 0 : index
    %44 = vector.load %arg4[%c0_13, %c0_14] : memref<768x128xf32, #tpu.memory_space<vmem>>, vector<768x128xf32>
    %cst_15 = arith.constant dense<0.000000e+00> : vector<4x128xf32>
    %45 = tpu.matmul %43, %44, %cst_15 {dimension_numbers = #tpu.dot_dimension_numbers<[1], [0], [0], [1], [0, 0, 1, 1], [], []>} : vector<4x768xf32>, vector<768x128xf32>, vector<4x128xf32> -> vector<4x128xf32>
    %c0_16 = arith.constant 0 : index
    %c0_17 = arith.constant 0 : index
    %46 = vector.load %arg5[%c0_16, %c0_17] : memref<1x128xf32, #tpu.memory_space<vmem>>, vector<1x128xf32>
    %47 = vector.broadcast %46 : vector<1x128xf32> to vector<4x128xf32>
    %48 = arith.addf %45, %47 : vector<4x128xf32>
    %c0_18 = arith.constant 0 : index
    %c0_19 = arith.constant 0 : index
    %49 = vector.load %arg6[%c0_18, %c0_19] : memref<4x128xf32, #tpu.memory_space<vmem>>, vector<4x128xf32>
    tpu.vector_store %arg6[%c0_18, %c0_19], %48 {strides = array<i32>} : memref<4x128xf32, #tpu.memory_space<vmem>>, vector<4x128xf32>,
    return
  }
  func.func @transform_0(%arg0: i32) -> (i32, i32) {
    %c0_i32 = arith.constant 0 : i32
    %c0_i32_0 = arith.constant 0 : i32
    return %arg0, %c0_i32 : i32, i32
  }
  func.func @transform_1(%arg0: i32) -> (i32, i32) {
    %c0_i32 = arith.constant 0 : i32
    %c0_i32_0 = arith.constant 0 : i32
    %c0_i32_1 = arith.constant 0 : i32
    return %c0_i32, %c0_i32_0 : i32, i32
  }
  func.func @transform_2(%arg0: i32) -> (i32, i32) {
    %c0_i32 = arith.constant 0 : i32
    %c0_i32_0 = arith.constant 0 : i32
    %c0_i32_1 = arith.constant 0 : i32
    return %c0_i32, %c0_i32_0 : i32, i32
  }
  func.func @transform_3(%arg0: i32) -> (i32, i32) {
    %c0_i32 = arith.constant 0 : i32
    %c0_i32_0 = arith.constant 0 : i32
    %c0_i32_1 = arith.constant 0 : i32
    return %c0_i32, %c0_i32_0 : i32, i32
  }
  func.func @transform_4(%arg0: i32) -> (i32, i32) {
    %c0_i32 = arith.constant 0 : i32
    %c0_i32_0 = arith.constant 0 : i32
    %c0_i32_1 = arith.constant 0 : i32
    return %c0_i32, %c0_i32_0 : i32, i32
  }
  func.func @transform_5(%arg0: i32) -> (i32, i32) {
    %c0_i32 = arith.constant 0 : i32
    %c0_i32_0 = arith.constant 0 : i32
    return %arg0, %c0_i32 : i32, i32
  }
}

</mosaic_0001>

<llo_original>
// kernel: tpu_custom_call.1
$region0: #{tpu_custom_call.1}
  #allocation0 [shape = 'u32[]', space=smem, size = 0x4, offset = 0x4, fixed_abs, tag = 'smem constant byte address 0x4 - core index']
  #allocation1 [shape = 'u32[144,128]{1,0:T(1,128)}', space=vmem, size = 0x12000, scoped, tag = 'internal scratch']
  %s0 = inlined_call_operand.hbm [shape: bf16[64,128], index: 0, kind: input, shape index: {}]
  %s1 = inlined_call_operand.hbm [shape: bf16[128,3072], index: 1, kind: input, shape index: {}]
  %s2 = inlined_call_operand.vmem [shape: f32[1,768], index: 2, kind: input, shape index: {}]
  %s3 = inlined_call_operand.hbm [shape: f32[768,128], index: 3, kind: input, shape index: {}]
  %s4 = inlined_call_operand.vmem [shape: f32[1,128], index: 4, kind: input, shape index: {}]
  %s5 = inlined_call_operand.hbm [shape: f32[4,128], index: 5, kind: output, shape index: {}]
  %s6 = sld [smem:[#allocation0]]
  $region42: #{tpu_custom_call.1} parent=0
    _
  %s8 = ssub.s32 1, %s6
  %s9 = scalar_select 0, %s8, %s6
  $region1: #{tpu_custom_call.1} parent=0
    #allocation2 [shape = 'u8[16384]{0}', space=vmem, size = 0x4000, scoped, tag = 'input window, operand 0, single buffered']
    #allocation3 [shape = 's32[1]{0}', space=sflag, size = 0x4, scoped, tag = 'scoped memory for tpu_custom_call.1']
    #allocation4 [shape = 's32[1]{0}', space=sflag, size = 0x4, scoped, tag = 'scoped memory for tpu_custom_call.1']
    #allocation5 [shape = 'u8[786432]{0}', space=vmem, size = 0xc0000, scoped, tag = 'input window, operand 1, single buffered']
    #allocation6 [shape = 's32[1]{0}', space=sflag, size = 0x4, scoped, tag = 'scoped memory for tpu_custom_call.1']
    #allocation7 [shape = 'u8[393216]{0}', space=vmem, size = 0x60000, scoped, tag = 'input window, operand 3, single buffered']
    #allocation8 [shape = 'u8[2048]{0}', space=vmem, size = 0x800, scoped, tag = 'output window, operand 0, single buffered']
    %10 = vsyncpa [#allocation3], 0
    %11 = vsyncpa [#allocation6], 0
    %12 = vsyncpa [#allocation4], 0
    // Predicated region
    $region2: #{tpu_custom_call.1} parent=1 // pred_check
      _
    $region3: #{tpu_custom_call.1} parent=1 // pred_check_branch
      %14 = sbr.rel (0) target = $region5
    $region4: #{tpu_custom_call.1} parent=1 // pred_region
      %s16 = ssub.s32 512, 512
      %17 = vsyncadd [#allocation3], %s16
      %s18 = sshll.u32 [#allocation2], 4
      %s19 = int_to_ptr.vmem [resolvable:$true] %s18
      %24 = dma.hbm_to_vmem [thread:$0]  %s0, 512, %s19, [#allocation3], 64, 64, 4
    $region5: #{tpu_custom_call.1} parent=1 // pred_fallthru
      _
    // Predicated region
    $region6: #{tpu_custom_call.1} parent=1 // pred_check
      _
    $region7: #{tpu_custom_call.1} parent=1 // pred_check_branch
      %26 = sbr.rel (0) target = $region9
    $region8: #{tpu_custom_call.1} parent=1 // pred_region
      %s28 = ssub.s32 24576, 24576
      %29 = vsyncadd [#allocation6], %s28
      %s30 = sshll.u32 [#allocation5], 4
      %s31 = int_to_ptr.vmem [resolvable:$true] %s30
      %36 = dma.hbm_to_vmem [thread:$0]  %s1, 24576, %s31, [#allocation6], 1536, 1536, 96
    $region9: #{tpu_custom_call.1} parent=1 // pred_fallthru
      _
    // Predicated region
    $region10: #{tpu_custom_call.1} parent=1 // pred_check
      _
    $region11: #{tpu_custom_call.1} parent=1 // pred_check_branch
      %38 = sbr.rel (0) target = $region13
    $region12: #{tpu_custom_call.1} parent=1 // pred_region
      _
    $region13: #{tpu_custom_call.1} parent=1 // pred_fallthru
      _
    // Predicated region
    $region14: #{tpu_custom_call.1} parent=1 // pred_check
      _
    $region15: #{tpu_custom_call.1} parent=1 // pred_check_branch
      %40 = sbr.rel (0) target = $region17
    $region16: #{tpu_custom_call.1} parent=1 // pred_region
      %s42 = ssub.s32 12288, 12288
      %43 = vsyncadd [#allocation6], %s42
      %s44 = sshll.u32 [#allocation7], 4
      %s45 = int_to_ptr.vmem [resolvable:$true] %s44
      %50 = dma.hbm_to_vmem [thread:$0]  %s3, 12288, %s45, [#allocation6], 128, 128, 8
    $region17: #{tpu_custom_call.1} parent=1 // pred_fallthru
      _
    // Predicated region
    $region18: #{tpu_custom_call.1} parent=1 // pred_check
      _
    $region19: #{tpu_custom_call.1} parent=1 // pred_check_branch
      %52 = sbr.rel (0) target = $region21
    $region20: #{tpu_custom_call.1} parent=1 // pred_region
      _
    $region21: #{tpu_custom_call.1} parent=1 // pred_fallthru
      _
    // Predicated region
    $region22: #{tpu_custom_call.1} parent=1 // pred_check
      _
    $region23: #{tpu_custom_call.1} parent=1 // pred_check_branch
      %54 = sbr.rel (0) target = $region25
    $region24: #{tpu_custom_call.1} parent=1 // pred_region
      %55 = dma.done [#allocation3], 512
    $region25: #{tpu_custom_call.1} parent=1 // pred_fallthru
      _
    // Predicated region
    $region26: #{tpu_custom_call.1} parent=1 // pred_check
      _
    $region27: #{tpu_custom_call.1} parent=1 // pred_check_branch
      %57 = sbr.rel (0) target = $region29
    $region28: #{tpu_custom_call.1} parent=1 // pred_region
      %58 = dma.done [#allocation6], 24576
    $region29: #{tpu_custom_call.1} parent=1 // pred_fallthru
      _
    // Predicated region
    $region30: #{tpu_custom_call.1} parent=1 // pred_check
      _
    $region31: #{tpu_custom_call.1} parent=1 // pred_check_branch
      %60 = sbr.rel (0) target = $region33
    $region32: #{tpu_custom_call.1} parent=1 // pred_region
      %61 = dma.done [#allocation6], 12288
    $region33: #{tpu_custom_call.1} parent=1 // pred_fallthru
      _
    %v63 = vld [vmem:[#allocation2] sm:$0xf]
    %v64 = vld [vmem:[#allocation2 + $0x4] sm:$0xf]
    %v65 = vld [vmem:[#allocation2 + $0x8] sm:$0xf]
    %v66 = vld [vmem:[#allocation2 + $0xc] sm:$0xf]
    %v67 = vld [vmem:[#allocation2 + $0x10] sm:$0xf]
    %v68 = vld [vmem:[#allocation2 + $0x14] sm:$0xf]
    %v69 = vld [vmem:[#allocation2 + $0x18] sm:$0xf]
    %v70 = vld [vmem:[#allocation2 + $0x1c] sm:$0xf]
    %v71 = vld [vmem:[#allocation5] sm:$0xff]
    %v72 = vld [vmem:[#allocation5 + $0x8] sm:$0xff]
    %v73 = vld [vmem:[#allocation5 + $0x10] sm:$0xff]
    %v74 = vld [vmem:[#allocation5 + $0x18] sm:$0xff]
    %v75 = vld [vmem:[#allocation5 + $0x20] sm:$0xff]
    %v76 = vld [vmem:[#allocation5 + $0x28] sm:$0xff]
    %v77 = vld [vmem:[#allocation5 + $0x30] sm:$0xff]
    %v78 = vld [vmem:[#allocation5 + $0x38] sm:$0xff]
    %v79 = vld [vmem:[#allocation5 + $0x40] sm:$0xff]
    %v80 = vld [vmem:[#allocation5 + $0x48] sm:$0xff]
    %v81 = vld [vmem:[#allocation5 + $0x50] sm:$0xff]
    %v82 = vld [vmem:[#allocation5 + $0x58] sm:$0xff]
    %v83 = vld [vmem:[#allocation5 + $0x60] sm:$0xff]
    %v84 = vld [vmem:[#allocation5 + $0x68] sm:$0xff]
    %v85 = vld [vmem:[#allocation5 + $0x70] sm:$0xff]
    %v86 = vld [vmem:[#allocation5 + $0x78] sm:$0xff]
    %v87 = vld [vmem:[#allocation5 + $0x80] sm:$0xff]
    %v88 = vld [vmem:[#allocation5 + $0x88] sm:$0xff]
    %v89 = vld [vmem:[#allocation5 + $0x90] sm:$0xff]
    %v90 = vld [vmem:[#allocation5 + $0x98] sm:$0xff]
    %v91 = vld [vmem:[#allocation5 + $0xa0] sm:$0xff]
    %v92 = vld [vmem:[#allocation5 + $0xa8] sm:$0xff]
    %v93 = vld [vmem:[#allocation5 + $0xb0] sm:$0xff]
    %v94 = vld [vmem:[#allocation5 + $0xb8] sm:$0xff]
    %v95 = vld [vmem:[#allocation5 + $0xc0] sm:$0xff]
    %v96 = vld [vmem:[#allocation5 + $0xc8] sm:$0xff]
    %v97 = vld [vmem:[#allocation5 + $0xd0] sm:$0xff]
    %v98 = vld [vmem:[#allocation5 + $0xd8] sm:$0xff]
    %v99 = vld [vmem:[#allocation5 + $0xe0] sm:$0xff]
    %v100 = vld [vmem:[#allocation5 + $0xe8] sm:$0xff]
    %v101 = vld [vmem:[#allocation5 + $0xf0] sm:$0xff]
    %v102 = vld [vmem:[#allocation5 + $0xf8] sm:$0xff]
    %v103 = vld [vmem:[#allocation5 + $0x100] sm:$0xff]
    %v104 = vld [vmem:[#allocation5 + $0x108] sm:$0xff]
    %v105 = vld [vmem:[#allocation5 + $0x110] sm:$0xff]
    %v106 = vld [vmem:[#allocation5 + $0x118] sm:$0xff]
    %v107 = vld [vmem:[#allocation5 + $0x120] sm:$0xff]
    %v108 = vld [vmem:[#allocation5 + $0x128] sm:$0xff]
    %v109 = vld [vmem:[#allocation5 + $0x130] sm:$0xff]
    %v110 = vld [vmem:[#allocation5 + $0x138] sm:$0xff]
    %v111 = vld [vmem:[#allocation5 + $0x140] sm:$0xff]
    %v112 = vld [vmem:[#allocation5 + $0x148] sm:$0xff]
    %v113 = vld [vmem:[#allocation5 + $0x150] sm:$0xff]
    %v114 = vld [vmem:[#allocation5 + $0x158] sm:$0xff]
    %v115 = vld [vmem:[#allocation5 + $0x160] sm:$0xff]
    %v116 = vld [vmem:[#allocation5 + $0x168] sm:$0xff]
    %v117 = vld [vmem:[#allocation5 + $0x170] sm:$0xff]
    %v118 = vld [vmem:[#allocation5 + $0x178] sm:$0xff]
    %v119 = vld [vmem:[#allocation5 + $0x180] sm:$0xff]
    %v120 = vld [vmem:[#allocation5 + $0x188] sm:$0xff]
    %v121 = vld [vmem:[#allocation5 + $0x190] sm:$0xff]
    %v122 = vld [vmem:[#allocation5 + $0x198] sm:$0xff]
    %v123 = vld [vmem:[#allocation5 + $0x1a0] sm:$0xff]
    %v124 = vld [vmem:[#allocation5 + $0x1a8] sm:$0xff]
    %v125 = vld [vmem:[#allocation5 + $0x1b0] sm:$0xff]
    %v126 = vld [vmem:[#allocation5 + $0x1b8] sm:$0xff]
    %v127 = vld [vmem:[#allocation5 + $0x1c0] sm:$0xff]
    %v128 = vld [vmem:[#allocation5 + $0x1c8] sm:$0xff]
    %v129 = vld [vmem:[#allocation5 + $0x1d0] sm:$0xff]
    %v130 = vld [vmem:[#allocation5 + $0x1d8] sm:$0xff]
    %v131 = vld [vmem:[#allocation5 + $0x1e0] sm:$0xff]
    %v132 = vld [vmem:[#allocation5 + $0x1e8] sm:$0xff]
    %v133 = vld [vmem:[#allocation5 + $0x1f0] sm:$0xff]
    %v134 = vld [vmem:[#allocation5 + $0x1f8] sm:$0xff]
    %v135 = vld [vmem:[#allocation5 + $0x200] sm:$0xff]
    %v136 = vld [vmem:[#allocation5 + $0x208] sm:$0xff]
    %v137 = vld [vmem:[#allocation5 + $0x210] sm:$0xff]
    %v138 = vld [vmem:[#allocation5 + $0x218] sm:$0xff]
    %v139 = vld [vmem:[#allocation5 + $0x220] sm:$0xff]
    %v140 = vld [vmem:[#allocation5 + $0x228] sm:$0xff]
    %v141 = vld [vmem:[#allocation5 + $0x230] sm:$0xff]
    %v142 = vld [vmem:[#allocation5 + $0x238] sm:$0xff]
    %v143 = vld [vmem:[#allocation5 + $0x240] sm:$0xff]
    %v144 = vld [vmem:[#allocation5 + $0x248] sm:$0xff]
    %v145 = vld [vmem:[#allocation5 + $0x250] sm:$0xff]
    %v146 = vld [vmem:[#allocation5 + $0x258] sm:$0xff]
    %v147 = vld [vmem:[#allocation5 + $0x260] sm:$0xff]
    %v148 = vld [vmem:[#allocation5 + $0x268] sm:$0xff]
    %v149 = vld [vmem:[#allocation5 + $0x270] sm:$0xff]
    %v150 = vld [vmem:[#allocation5 + $0x278] sm:$0xff]
    %v151 = vld [vmem:[#allocation5 + $0x280] sm:$0xff]
    %v152 = vld [vmem:[#allocation5 + $0x288] sm:$0xff]
    %v153 = vld [vmem:[#allocation5 + $0x290] sm:$0xff]
    %v154 = vld [vmem:[#allocation5 + $0x298] sm:$0xff]
    %v155 = vld [vmem:[#allocation5 + $0x2a0] sm:$0xff]
    %v156 = vld [vmem:[#allocation5 + $0x2a8] sm:$0xff]
    %v157 = vld [vmem:[#allocation5 + $0x2b0] sm:$0xff]
    %v158 = vld [vmem:[#allocation5 + $0x2b8] sm:$0xff]
    %v159 = vld [vmem:[#allocation5 + $0x2c0] sm:$0xff]
    %v160 = vld [vmem:[#allocation5 + $0x2c8] sm:$0xff]
    %v161 = vld [vmem:[#allocation5 + $0x2d0] sm:$0xff]
    %v162 = vld [vmem:[#allocation5 + $0x2d8] sm:$0xff]
    %v163 = vld [vmem:[#allocation5 + $0x2e0] sm:$0xff]
    %v164 = vld [vmem:[#allocation5 + $0x2e8] sm:$0xff]
    %v165 = vld [vmem:[#allocation5 + $0x2f0] sm:$0xff]
    %v166 = vld [vmem:[#allocation5 + $0x2f8] sm:$0xff]
    %v167 = vld [vmem:[#allocation5 + $0x300] sm:$0xff]
    %v168 = vld [vmem:[#allocation5 + $0x308] sm:$0xff]
    %v169 = vld [vmem:[#allocation5 + $0x310] sm:$0xff]
    %v170 = vld [vmem:[#allocation5 + $0x318] sm:$0xff]
    %v171 = vld [vmem:[#allocation5 + $0x320] sm:$0xff]
    %v172 = vld [vmem:[#allocation5 + $0x328] sm:$0xff]
    %v173 = vld [vmem:[#allocation5 + $0x330] sm:$0xff]
    %v174 = vld [vmem:[#allocation5 + $0x338] sm:$0xff]
    %v175 = vld [vmem:[#allocation5 + $0x340] sm:$0xff]
    %v176 = vld [vmem:[#allocation5 + $0x348] sm:$0xff]
    %v177 = vld [vmem:[#allocation5 + $0x350] sm:$0xff]
    %v178 = vld [vmem:[#allocation5 + $0x358] sm:$0xff]
    %v179 = vld [vmem:[#allocation5 + $0x360] sm:$0xff]
    %v180 = vld [vmem:[#allocation5 + $0x368] sm:$0xff]
    %v181 = vld [vmem:[#allocation5 + $0x370] sm:$0xff]
    %v182 = vld [vmem:[#allocation5 + $0x378] sm:$0xff]
    %v183 = vld [vmem:[#allocation5 + $0x380] sm:$0xff]
    %v184 = vld [vmem:[#allocation5 + $0x388] sm:$0xff]
    %v185 = vld [vmem:[#allocation5 + $0x390] sm:$0xff]
    %v186 = vld [vmem:[#allocation5 + $0x398] sm:$0xff]
    %v187 = vld [vmem:[#allocation5 + $0x3a0] sm:$0xff]
    %v188 = vld [vmem:[#allocation5 + $0x3a8] sm:$0xff]
    %v189 = vld [vmem:[#allocation5 + $0x3b0] sm:$0xff]
    %v190 = vld [vmem:[#allocation5 + $0x3b8] sm:$0xff]
    %v191 = vld [vmem:[#allocation5 + $0x3c0] sm:$0xff]
    %v192 = vld [vmem:[#allocation5 + $0x3c8] sm:$0xff]
    %v193 = vld [vmem:[#allocation5 + $0x3d0] sm:$0xff]
    %v194 = vld [vmem:[#allocation5 + $0x3d8] sm:$0xff]
    %v195 = vld [vmem:[#allocation5 + $0x3e0] sm:$0xff]
    %v196 = vld [vmem:[#allocation5 + $0x3e8] sm:$0xff]
    %v197 = vld [vmem:[#allocation5 + $0x3f0] sm:$0xff]
    %v198 = vld [vmem:[#allocation5 + $0x3f8] sm:$0xff]
    %v199 = vld [vmem:[#allocation5 + $0x400] sm:$0xff]
    %v200 = vld [vmem:[#allocation5 + $0x408] sm:$0xff]
    %v201 = vld [vmem:[#allocation5 + $0x410] sm:$0xff]
    %v202 = vld [vmem:[#allocation5 + $0x418] sm:$0xff]
    %v203 = vld [vmem:[#allocation5 + $0x420] sm:$0xff]
    %v204 = vld [vmem:[#allocation5 + $0x428] sm:$0xff]
    %v205 = vld [vmem:[#allocation5 + $0x430] sm:$0xff]
    %v206 = vld [vmem:[#allocation5 + $0x438] sm:$0xff]
    %v207 = vld [vmem:[#allocation5 + $0x440] sm:$0xff]
    %v208 = vld [vmem:[#allocation5 + $0x448] sm:$0xff]
    %v209 = vld [vmem:[#allocation5 + $0x450] sm:$0xff]
    %v210 = vld [vmem:[#allocation5 + $0x458] sm:$0xff]
    %v211 = vld [vmem:[#allocation5 + $0x460] sm:$0xff]
    %v212 = vld [vmem:[#allocation5 + $0x468] sm:$0xff]
    %v213 = vld [vmem:[#allocation5 + $0x470] sm:$0xff]
    %v214 = vld [vmem:[#allocation5 + $0x478] sm:$0xff]
    %v215 = vld [vmem:[#allocation5 + $0x480] sm:$0xff]
    %v216 = vld [vmem:[#allocation5 + $0x488] sm:$0xff]
    %v217 = vld [vmem:[#allocation5 + $0x490] sm:$0xff]
    %v218 = vld [vmem:[#allocation5 + $0x498] sm:$0xff]
    %v219 = vld [vmem:[#allocation5 + $0x4a0] sm:$0xff]
    %v220 = vld [vmem:[#allocation5 + $0x4a8] sm:$0xff]
    %v221 = vld [vmem:[#allocation5 + $0x4b0] sm:$0xff]
    %v222 = vld [vmem:[#allocation5 + $0x4b8] sm:$0xff]
    %v223 = vld [vmem:[#allocation5 + $0x4c0] sm:$0xff]
    %v224 = vld [vmem:[#allocation5 + $0x4c8] sm:$0xff]
    %v225 = vld [vmem:[#allocation5 + $0x4d0] sm:$0xff]
    %v226 = vld [vmem:[#allocation5 + $0x4d8] sm:$0xff]
    %v227 = vld [vmem:[#allocation5 + $0x4e0] sm:$0xff]
    %v228 = vld [vmem:[#allocation5 + $0x4e8] sm:$0xff]
    %v229 = vld [vmem:[#allocation5 + $0x4f0] sm:$0xff]
    %v230 = vld [vmem:[#allocation5 + $0x4f8] sm:$0xff]
    %v231 = vld [vmem:[#allocation5 + $0x500] sm:$0xff]
    %v232 = vld [vmem:[#allocation5 + $0x508] sm:$0xff]
    %v233 = vld [vmem:[#allocation5 + $0x510] sm:$0xff]
    %v234 = vld [vmem:[#allocation5 + $0x518] sm:$0xff]
    %v235 = vld [vmem:[#allocation5 + $0x520] sm:$0xff]
    %v236 = vld [vmem:[#allocation5 + $0x528] sm:$0xff]
    %v237 = vld [vmem:[#allocation5 + $0x530] sm:$0xff]
    %v238 = vld [vmem:[#allocation5 + $0x538] sm:$0xff]
    %v239 = vld [vmem:[#allocation5 + $0x540] sm:$0xff]
    %v240 = vld [vmem:[#allocation5 + $0x548] sm:$0xff]
    %v241 = vld [vmem:[#allocation5 + $0x550] sm:$0xff]
    %v242 = vld [vmem:[#allocation5 + $0x558] sm:$0xff]
    %v243 = vld [vmem:[#allocation5 + $0x560] sm:$0xff]
    %v244 = vld [vmem:[#allocation5 + $0x568] sm:$0xff]
    %v245 = vld [vmem:[#allocation5 + $0x570] sm:$0xff]
    %v246 = vld [vmem:[#allocation5 + $0x578] sm:$0xff]
    %v247 = vld [vmem:[#allocation5 + $0x580] sm:$0xff]
    %v248 = vld [vmem:[#allocation5 + $0x588] sm:$0xff]
    %v249 = vld [vmem:[#allocation5 + $0x590] sm:$0xff]
    %v250 = vld [vmem:[#allocation5 + $0x598] sm:$0xff]
    %v251 = vld [vmem:[#allocation5 + $0x5a0] sm:$0xff]
    %v252 = vld [vmem:[#allocation5 + $0x5a8] sm:$0xff]
    %v253 = vld [vmem:[#allocation5 + $0x5b0] sm:$0xff]
    %v254 = vld [vmem:[#allocation5 + $0x5b8] sm:$0xff]
    %v255 = vld [vmem:[#allocation5 + $0x5c0] sm:$0xff]
    %v256 = vld [vmem:[#allocation5 + $0x5c8] sm:$0xff]
    %v257 = vld [vmem:[#allocation5 + $0x5d0] sm:$0xff]
    %v258 = vld [vmem:[#allocation5 + $0x5d8] sm:$0xff]
    %v259 = vld [vmem:[#allocation5 + $0x5e0] sm:$0xff]
    %v260 = vld [vmem:[#allocation5 + $0x5e8] sm:$0xff]
    %v261 = vld [vmem:[#allocation5 + $0x5f0] sm:$0xff]
    %v262 = vld [vmem:[#allocation5 + $0x5f8] sm:$0xff]
    %v271 = vunpack.c.l.b16 %v63
    %v272 = vunpack.c.l.b16 %v64
    %v273 = vunpack.c.l.b16 %v65
    %v274 = vunpack.c.l.b16 %v66
    %v275 = vunpack.c.l.b16 %v67
    %v276 = vunpack.c.l.b16 %v68
    %v277 = vunpack.c.l.b16 %v69
    %v278 = vunpack.c.l.b16 %v70
    %v279 = vpack.c.b16 %v272, %v271
    %v280 = vpack.c.b16 %v274, %v273
    %v281 = vpack.c.b16 %v276, %v275
    %v282 = vpack.c.b16 %v278, %v277
    %v479 = vunpack.c.l.b16 %v71
    %v480 = vunpack.c.h.b16 %v71
    %v481 = vunpack.c.l.b16 %v72
    %v482 = vunpack.c.h.b16 %v72
    %v483 = vunpack.c.l.b16 %v73
    %v484 = vunpack.c.h.b16 %v73
    %v485 = vunpack.c.l.b16 %v74
    %v486 = vunpack.c.h.b16 %v74
    %v487 = vunpack.c.l.b16 %v75
    %v488 = vunpack.c.h.b16 %v75
    %v489 = vunpack.c.l.b16 %v76
    %v490 = vunpack.c.h.b16 %v76
    %v491 = vunpack.c.l.b16 %v77
    %v492 = vunpack.c.h.b16 %v77
    %v493 = vunpack.c.l.b16 %v78
    %v494 = vunpack.c.h.b16 %v78
    %v495 = vunpack.c.l.b16 %v79
    %v496 = vunpack.c.h.b16 %v79
    %v497 = vunpack.c.l.b16 %v80
    %v498 = vunpack.c.h.b16 %v80
    %v499 = vunpack.c.l.b16 %v81
    %v500 = vunpack.c.h.b16 %v81
    %v501 = vunpack.c.l.b16 %v82
    %v502 = vunpack.c.h.b16 %v82
    %v503 = vunpack.c.l.b16 %v83
    %v504 = vunpack.c.h.b16 %v83
    %v505 = vunpack.c.l.b16 %v84
    %v506 = vunpack.c.h.b16 %v84
    %v507 = vunpack.c.l.b16 %v85
    %v508 = vunpack.c.h.b16 %v85
    %v509 = vunpack.c.l.b16 %v86
    %v510 = vunpack.c.h.b16 %v86
    %v511 = vunpack.c.l.b16 %v87
    %v512 = vunpack.c.h.b16 %v87
    %v513 = vunpack.c.l.b16 %v88
    %v514 = vunpack.c.h.b16 %v88
    %v515 = vunpack.c.l.b16 %v89
    %v516 = vunpack.c.h.b16 %v89
    %v517 = vunpack.c.l.b16 %v90
    %v518 = vunpack.c.h.b16 %v90
    %v519 = vunpack.c.l.b16 %v91
    %v520 = vunpack.c.h.b16 %v91
    %v521 = vunpack.c.l.b16 %v92
    %v522 = vunpack.c.h.b16 %v92
    %v523 = vunpack.c.l.b16 %v93
    %v524 = vunpack.c.h.b16 %v93
    %v525 = vunpack.c.l.b16 %v94
    %v526 = vunpack.c.h.b16 %v94
    %v527 = vunpack.c.l.b16 %v95
    %v528 = vunpack.c.h.b16 %v95
    %v529 = vunpack.c.l.b16 %v96
    %v530 = vunpack.c.h.b16 %v96
    %v531 = vunpack.c.l.b16 %v97
    %v532 = vunpack.c.h.b16 %v97
    %v533 = vunpack.c.l.b16 %v98
    %v534 = vunpack.c.h.b16 %v98
    %v535 = vunpack.c.l.b16 %v99
    %v536 = vunpack.c.h.b16 %v99
    %v537 = vunpack.c.l.b16 %v100
    %v538 = vunpack.c.h.b16 %v100
    %v539 = vunpack.c.l.b16 %v101
    %v540 = vunpack.c.h.b16 %v101
    %v541 = vunpack.c.l.b16 %v102
    %v542 = vunpack.c.h.b16 %v102
    %v543 = vunpack.c.l.b16 %v103
    %v544 = vunpack.c.h.b16 %v103
    %v545 = vunpack.c.l.b16 %v104
    %v546 = vunpack.c.h.b16 %v104
    %v547 = vunpack.c.l.b16 %v105
    %v548 = vunpack.c.h.b16 %v105
    %v549 = vunpack.c.l.b16 %v106
    %v550 = vunpack.c.h.b16 %v106
    %v551 = vunpack.c.l.b16 %v107
    %v552 = vunpack.c.h.b16 %v107
    %v553 = vunpack.c.l.b16 %v108
    %v554 = vunpack.c.h.b16 %v108
    %v555 = vunpack.c.l.b16 %v109
    %v556 = vunpack.c.h.b16 %v109
    %v557 = vunpack.c.l.b16 %v110
    %v558 = vunpack.c.h.b16 %v110
    %v559 = vunpack.c.l.b16 %v111
    %v560 = vunpack.c.h.b16 %v111
    %v561 = vunpack.c.l.b16 %v112
    %v562 = vunpack.c.h.b16 %v112
    %v563 = vunpack.c.l.b16 %v113
    %v564 = vunpack.c.h.b16 %v113
    %v565 = vunpack.c.l.b16 %v114
    %v566 = vunpack.c.h.b16 %v114
    %v567 = vunpack.c.l.b16 %v115
    %v568 = vunpack.c.h.b16 %v115
    %v569 = vunpack.c.l.b16 %v116
    %v570 = vunpack.c.h.b16 %v116
    %v571 = vunpack.c.l.b16 %v117
    %v572 = vunpack.c.h.b16 %v117
    %v573 = vunpack.c.l.b16 %v118
    %v574 = vunpack.c.h.b16 %v118
    %v575 = vunpack.c.l.b16 %v119
    %v576 = vunpack.c.h.b16 %v119
    %v577 = vunpack.c.l.b16 %v120
    %v578 = vunpack.c.h.b16 %v120
    %v579 = vunpack.c.l.b16 %v121
    %v580 = vunpack.c.h.b16 %v121
    %v581 = vunpack.c.l.b16 %v122
    %v582 = vunpack.c.h.b16 %v122
    %v583 = vunpack.c.l.b16 %v123
    %v584 = vunpack.c.h.b16 %v123
    %v585 = vunpack.c.l.b16 %v124
    %v586 = vunpack.c.h.b16 %v124
    %v587 = vunpack.c.l.b16 %v125
    %v588 = vunpack.c.h.b16 %v125
    %v589 = vunpack.c.l.b16 %v126
    %v590 = vunpack.c.h.b16 %v126
    %v591 = vunpack.c.l.b16 %v127
    %v592 = vunpack.c.h.b16 %v127
    %v593 = vunpack.c.l.b16 %v128
    %v594 = vunpack.c.h.b16 %v128
    %v595 = vunpack.c.l.b16 %v129
    %v596 = vunpack.c.h.b16 %v129
    %v597 = vunpack.c.l.b16 %v130
    %v598 = vunpack.c.h.b16 %v130
    %v599 = vunpack.c.l.b16 %v131
    %v600 = vunpack.c.h.b16 %v131
    %v601 = vunpack.c.l.b16 %v132
    %v602 = vunpack.c.h.b16 %v132
    %v603 = vunpack.c.l.b16 %v133
    %v604 = vunpack.c.h.b16 %v133
    %v605 = vunpack.c.l.b16 %v134
    %v606 = vunpack.c.h.b16 %v134
    %v607 = vunpack.c.l.b16 %v135
    %v608 = vunpack.c.h.b16 %v135
    %v609 = vunpack.c.l.b16 %v136
    %v610 = vunpack.c.h.b16 %v136
    %v611 = vunpack.c.l.b16 %v137
    %v612 = vunpack.c.h.b16 %v137
    %v613 = vunpack.c.l.b16 %v138
    %v614 = vunpack.c.h.b16 %v138
    %v615 = vunpack.c.l.b16 %v139
    %v616 = vunpack.c.h.b16 %v139
    %v617 = vunpack.c.l.b16 %v140
    %v618 = vunpack.c.h.b16 %v140
    %v619 = vunpack.c.l.b16 %v141
    %v620 = vunpack.c.h.b16 %v141
    %v621 = vunpack.c.l.b16 %v142
    %v622 = vunpack.c.h.b16 %v142
    %v623 = vunpack.c.l.b16 %v143
    %v624 = vunpack.c.h.b16 %v143
    %v625 = vunpack.c.l.b16 %v144
    %v626 = vunpack.c.h.b16 %v144
    %v627 = vunpack.c.l.b16 %v145
    %v628 = vunpack.c.h.b16 %v145
    %v629 = vunpack.c.l.b16 %v146
    %v630 = vunpack.c.h.b16 %v146
    %v631 = vunpack.c.l.b16 %v147
    %v632 = vunpack.c.h.b16 %v147
    %v633 = vunpack.c.l.b16 %v148
    %v634 = vunpack.c.h.b16 %v148
    %v635 = vunpack.c.l.b16 %v149
    %v636 = vunpack.c.h.b16 %v149
    %v637 = vunpack.c.l.b16 %v150
    %v638 = vunpack.c.h.b16 %v150
    %v639 = vunpack.c.l.b16 %v151
    %v640 = vunpack.c.h.b16 %v151
    %v641 = vunpack.c.l.b16 %v152
    %v642 = vunpack.c.h.b16 %v152
    %v643 = vunpack.c.l.b16 %v153
    %v644 = vunpack.c.h.b16 %v153
    %v645 = vunpack.c.l.b16 %v154
    %v646 = vunpack.c.h.b16 %v154
    %v647 = vunpack.c.l.b16 %v155
    %v648 = vunpack.c.h.b16 %v155
    %v649 = vunpack.c.l.b16 %v156
    %v650 = vunpack.c.h.b16 %v156
    %v651 = vunpack.c.l.b16 %v157
    %v652 = vunpack.c.h.b16 %v157
    %v653 = vunpack.c.l.b16 %v158
    %v654 = vunpack.c.h.b16 %v158
    %v655 = vunpack.c.l.b16 %v159
    %v656 = vunpack.c.h.b16 %v159
    %v657 = vunpack.c.l.b16 %v160
    %v658 = vunpack.c.h.b16 %v160
    %v659 = vunpack.c.l.b16 %v161
    %v660 = vunpack.c.h.b16 %v161
    %v661 = vunpack.c.l.b16 %v162
    %v662 = vunpack.c.h.b16 %v162
    %v663 = vunpack.c.l.b16 %v163
    %v664 = vunpack.c.h.b16 %v163
    %v665 = vunpack.c.l.b16 %v164
    %v666 = vunpack.c.h.b16 %v164
    %v667 = vunpack.c.l.b16 %v165
    %v668 = vunpack.c.h.b16 %v165
    %v669 = vunpack.c.l.b16 %v166
    %v670 = vunpack.c.h.b16 %v166
    %v671 = vunpack.c.l.b16 %v167
    %v672 = vunpack.c.h.b16 %v167
    %v673 = vunpack.c.l.b16 %v168
    %v674 = vunpack.c.h.b16 %v168
    %v675 = vunpack.c.l.b16 %v169
    %v676 = vunpack.c.h.b16 %v169
    %v677 = vunpack.c.l.b16 %v170
    %v678 = vunpack.c.h.b16 %v170
    %v679 = vunpack.c.l.b16 %v171
    %v680 = vunpack.c.h.b16 %v171
    %v681 = vunpack.c.l.b16 %v172
    %v682 = vunpack.c.h.b16 %v172
    %v683 = vunpack.c.l.b16 %v173
    %v684 = vunpack.c.h.b16 %v173
    %v685 = vunpack.c.l.b16 %v174
    %v686 = vunpack.c.h.b16 %v174
    %v687 = vunpack.c.l.b16 %v175
    %v688 = vunpack.c.h.b16 %v175
    %v689 = vunpack.c.l.b16 %v176
    %v690 = vunpack.c.h.b16 %v176
    %v691 = vunpack.c.l.b16 %v177
    %v692 = vunpack.c.h.b16 %v177
    %v693 = vunpack.c.l.b16 %v178
    %v694 = vunpack.c.h.b16 %v178
    %v695 = vunpack.c.l.b16 %v179
    %v696 = vunpack.c.h.b16 %v179
    %v697 = vunpack.c.l.b16 %v180
    %v698 = vunpack.c.h.b16 %v180
    %v699 = vunpack.c.l.b16 %v181
    %v700 = vunpack.c.h.b16 %v181
    %v701 = vunpack.c.l.b16 %v182
    %v702 = vunpack.c.h.b16 %v182
    %v703 = vunpack.c.l.b16 %v183
    %v704 = vunpack.c.h.b16 %v183
    %v705 = vunpack.c.l.b16 %v184
    %v706 = vunpack.c.h.b16 %v184
    %v707 = vunpack.c.l.b16 %v185
    %v708 = vunpack.c.h.b16 %v185
    %v709 = vunpack.c.l.b16 %v186
    %v710 = vunpack.c.h.b16 %v186
    %v711 = vunpack.c.l.b16 %v187
    %v712 = vunpack.c.h.b16 %v187
    %v713 = vunpack.c.l.b16 %v188
    %v714 = vunpack.c.h.b16 %v188
    %v715 = vunpack.c.l.b16 %v189
    %v716 = vunpack.c.h.b16 %v189
    %v717 = vunpack.c.l.b16 %v190
    %v718 = vunpack.c.h.b16 %v190
    %v719 = vunpack.c.l.b16 %v191
    %v720 = vunpack.c.h.b16 %v191
    %v721 = vunpack.c.l.b16 %v192
    %v722 = vunpack.c.h.b16 %v192
    %v723 = vunpack.c.l.b16 %v193
    %v724 = vunpack.c.h.b16 %v193
    %v725 = vunpack.c.l.b16 %v194
    %v726 = vunpack.c.h.b16 %v194
    %v727 = vunpack.c.l.b16 %v195
    %v728 = vunpack.c.h.b16 %v195
    %v729 = vunpack.c.l.b16 %v196
    %v730 = vunpack.c.h.b16 %v196
    %v731 = vunpack.c.l.b16 %v197
    %v732 = vunpack.c.h.b16 %v197
    %v733 = vunpack.c.l.b16 %v198
    %v734 = vunpack.c.h.b16 %v198
    %v735 = vunpack.c.l.b16 %v199
    %v736 = vunpack.c.h.b16 %v199
    %v737 = vunpack.c.l.b16 %v200
    %v738 = vunpack.c.h.b16 %v200
    %v739 = vunpack.c.l.b16 %v201
    %v740 = vunpack.c.h.b16 %v201
    %v741 = vunpack.c.l.b16 %v202
    %v742 = vunpack.c.h.b16 %v202
    %v743 = vunpack.c.l.b16 %v203
    %v744 = vunpack.c.h.b16 %v203
    %v745 = vunpack.c.l.b16 %v204
    %v746 = vunpack.c.h.b16 %v204
    %v747 = vunpack.c.l.b16 %v205
    %v748 = vunpack.c.h.b16 %v205
    %v749 = vunpack.c.l.b16 %v206
    %v750 = vunpack.c.h.b16 %v206
    %v751 = vunpack.c.l.b16 %v207
    %v752 = vunpack.c.h.b16 %v207
    %v753 = vunpack.c.l.b16 %v208
    %v754 = vunpack.c.h.b16 %v208
    %v755 = vunpack.c.l.b16 %v209
    %v756 = vunpack.c.h.b16 %v209
    %v757 = vunpack.c.l.b16 %v210
    %v758 = vunpack.c.h.b16 %v210
    %v759 = vunpack.c.l.b16 %v211
    %v760 = vunpack.c.h.b16 %v211
    %v761 = vunpack.c.l.b16 %v212
    %v762 = vunpack.c.h.b16 %v212
    %v763 = vunpack.c.l.b16 %v213
    %v764 = vunpack.c.h.b16 %v213
    %v765 = vunpack.c.l.b16 %v214
    %v766 = vunpack.c.h.b16 %v214
    %v767 = vunpack.c.l.b16 %v215
    %v768 = vunpack.c.h.b16 %v215
    %v769 = vunpack.c.l.b16 %v216
    %v770 = vunpack.c.h.b16 %v216
    %v771 = vunpack.c.l.b16 %v217
    %v772 = vunpack.c.h.b16 %v217
    %v773 = vunpack.c.l.b16 %v218
    %v774 = vunpack.c.h.b16 %v218
    %v775 = vunpack.c.l.b16 %v219
    %v776 = vunpack.c.h.b16 %v219
    %v777 = vunpack.c.l.b16 %v220
    %v778 = vunpack.c.h.b16 %v220
    %v779 = vunpack.c.l.b16 %v221
    %v780 = vunpack.c.h.b16 %v221
    %v781 = vunpack.c.l.b16 %v222
    %v782 = vunpack.c.h.b16 %v222
    %v783 = vunpack.c.l.b16 %v223
    %v784 = vunpack.c.h.b16 %v223
    %v785 = vunpack.c.l.b16 %v224
    %v786 = vunpack.c.h.b16 %v224
    %v787 = vunpack.c.l.b16 %v225
    %v788 = vunpack.c.h.b16 %v225
    %v789 = vunpack.c.l.b16 %v226
    %v790 = vunpack.c.h.b16 %v226
    %v791 = vunpack.c.l.b16 %v227
    %v792 = vunpack.c.h.b16 %v227
    %v793 = vunpack.c.l.b16 %v228
    %v794 = vunpack.c.h.b16 %v228
    %v795 = vunpack.c.l.b16 %v229
    %v796 = vunpack.c.h.b16 %v229
    %v797 = vunpack.c.l.b16 %v230
    %v798 = vunpack.c.h.b16 %v230
    %v799 = vunpack.c.l.b16 %v231
    %v800 = vunpack.c.h.b16 %v231
    %v801 = vunpack.c.l.b16 %v232
    %v802 = vunpack.c.h.b16 %v232
    %v803 = vunpack.c.l.b16 %v233
    %v804 = vunpack.c.h.b16 %v233
    %v805 = vunpack.c.l.b16 %v234
    %v806 = vunpack.c.h.b16 %v234
    %v807 = vunpack.c.l.b16 %v235
    %v808 = vunpack.c.h.b16 %v235
    %v809 = vunpack.c.l.b16 %v236
    %v810 = vunpack.c.h.b16 %v236
    %v811 = vunpack.c.l.b16 %v237
    %v812 = vunpack.c.h.b16 %v237
    %v813 = vunpack.c.l.b16 %v238
    %v814 = vunpack.c.h.b16 %v238
    %v815 = vunpack.c.l.b16 %v239
    %v816 = vunpack.c.h.b16 %v239
    %v817 = vunpack.c.l.b16 %v240
    %v818 = vunpack.c.h.b16 %v240
    %v819 = vunpack.c.l.b16 %v241
    %v820 = vunpack.c.h.b16 %v241
    %v821 = vunpack.c.l.b16 %v242
    %v822 = vunpack.c.h.b16 %v242
    %v823 = vunpack.c.l.b16 %v243
    %v824 = vunpack.c.h.b16 %v243
    %v825 = vunpack.c.l.b16 %v244
    %v826 = vunpack.c.h.b16 %v244
    %v827 = vunpack.c.l.b16 %v245
    %v828 = vunpack.c.h.b16 %v245
    %v829 = vunpack.c.l.b16 %v246
    %v830 = vunpack.c.h.b16 %v246
    %v831 = vunpack.c.l.b16 %v247
    %v832 = vunpack.c.h.b16 %v247
    %v833 = vunpack.c.l.b16 %v248
    %v834 = vunpack.c.h.b16 %v248
    %v835 = vunpack.c.l.b16 %v249
    %v836 = vunpack.c.h.b16 %v249
    %v837 = vunpack.c.l.b16 %v250
    %v838 = vunpack.c.h.b16 %v250
    %v839 = vunpack.c.l.b16 %v251
    %v840 = vunpack.c.h.b16 %v251
    %v841 = vunpack.c.l.b16 %v252
    %v842 = vunpack.c.h.b16 %v252
    %v843 = vunpack.c.l.b16 %v253
    %v844 = vunpack.c.h.b16 %v253
    %v845 = vunpack.c.l.b16 %v254
    %v846 = vunpack.c.h.b16 %v254
    %v847 = vunpack.c.l.b16 %v255
    %v848 = vunpack.c.h.b16 %v255
    %v849 = vunpack.c.l.b16 %v256
    %v850 = vunpack.c.h.b16 %v256
    %v851 = vunpack.c.l.b16 %v257
    %v852 = vunpack.c.h.b16 %v257
    %v853 = vunpack.c.l.b16 %v258
    %v854 = vunpack.c.h.b16 %v258
    %v855 = vunpack.c.l.b16 %v259
    %v856 = vunpack.c.h.b16 %v259
    %v857 = vunpack.c.l.b16 %v260
    %v858 = vunpack.c.h.b16 %v260
    %v859 = vunpack.c.l.b16 %v261
    %v860 = vunpack.c.h.b16 %v261
    %v861 = vunpack.c.l.b16 %v262
    %v862 = vunpack.c.h.b16 %v262
    %v863 = vpack.c.b16 %v503, %v479
    %v864 = vpack.c.b16 %v504, %v480
    %v865 = vpack.c.b16 %v505, %v481
    %v866 = vpack.c.b16 %v506, %v482
    %v867 = vpack.c.b16 %v507, %v483
    %v868 = vpack.c.b16 %v508, %v484
    %v869 = vpack.c.b16 %v509, %v485
    %v870 = vpack.c.b16 %v510, %v486
    %v871 = vpack.c.b16 %v511, %v487
    %v872 = vpack.c.b16 %v512, %v488
    %v873 = vpack.c.b16 %v513, %v489
    %v874 = vpack.c.b16 %v514, %v490
    %v875 = vpack.c.b16 %v515, %v491
    %v876 = vpack.c.b16 %v516, %v492
    %v877 = vpack.c.b16 %v517, %v493
    %v878 = vpack.c.b16 %v518, %v494
    %v879 = vpack.c.b16 %v519, %v495
    %v880 = vpack.c.b16 %v520, %v496
    %v881 = vpack.c.b16 %v521, %v497
    %v882 = vpack.c.b16 %v522, %v498
    %v883 = vpack.c.b16 %v523, %v499
    %v884 = vpack.c.b16 %v524, %v500
    %v885 = vpack.c.b16 %v525, %v501
    %v886 = vpack.c.b16 %v526, %v502
    %v887 = vpack.c.b16 %v551, %v527
    %v888 = vpack.c.b16 %v552, %v528
    %v889 = vpack.c.b16 %v553, %v529
    %v890 = vpack.c.b16 %v554, %v530
    %v891 = vpack.c.b16 %v555, %v531
    %v892 = vpack.c.b16 %v556, %v532
    %v893 = vpack.c.b16 %v557, %v533
    %v894 = vpack.c.b16 %v558, %v534
    %v895 = vpack.c.b16 %v559, %v535
    %v896 = vpack.c.b16 %v560, %v536
    %v897 = vpack.c.b16 %v561, %v537
    %v898 = vpack.c.b16 %v562, %v538
    %v899 = vpack.c.b16 %v563, %v539
    %v900 = vpack.c.b16 %v564, %v540
    %v901 = vpack.c.b16 %v565, %v541
    %v902 = vpack.c.b16 %v566, %v542
    %v903 = vpack.c.b16 %v567, %v543
    %v904 = vpack.c.b16 %v568, %v544
    %v905 = vpack.c.b16 %v569, %v545
    %v906 = vpack.c.b16 %v570, %v546
    %v907 = vpack.c.b16 %v571, %v547
    %v908 = vpack.c.b16 %v572, %v548
    %v909 = vpack.c.b16 %v573, %v549
    %v910 = vpack.c.b16 %v574, %v550
    %v911 = vpack.c.b16 %v599, %v575
    %v912 = vpack.c.b16 %v600, %v576
    %v913 = vpack.c.b16 %v601, %v577
    %v914 = vpack.c.b16 %v602, %v578
    %v915 = vpack.c.b16 %v603, %v579
    %v916 = vpack.c.b16 %v604, %v580
    %v917 = vpack.c.b16 %v605, %v581
    %v918 = vpack.c.b16 %v606, %v582
    %v919 = vpack.c.b16 %v607, %v583
    %v920 = vpack.c.b16 %v608, %v584
    %v921 = vpack.c.b16 %v609, %v585
    %v922 = vpack.c.b16 %v610, %v586
    %v923 = vpack.c.b16 %v611, %v587
    %v924 = vpack.c.b16 %v612, %v588
    %v925 = vpack.c.b16 %v613, %v589
    %v926 = vpack.c.b16 %v614, %v590
    %v927 = vpack.c.b16 %v615, %v591
    %v928 = vpack.c.b16 %v616, %v592
    %v929 = vpack.c.b16 %v617, %v593
    %v930 = vpack.c.b16 %v618, %v594
    %v931 = vpack.c.b16 %v619, %v595
    %v932 = vpack.c.b16 %v620, %v596
    %v933 = vpack.c.b16 %v621, %v597
    %v934 = vpack.c.b16 %v622, %v598
    %v935 = vpack.c.b16 %v647, %v623
    %v936 = vpack.c.b16 %v648, %v624
    %v937 = vpack.c.b16 %v649, %v625
    %v938 = vpack.c.b16 %v650, %v626
    %v939 = vpack.c.b16 %v651, %v627
    %v940 = vpack.c.b16 %v652, %v628
    %v941 = vpack.c.b16 %v653, %v629
    %v942 = vpack.c.b16 %v654, %v630
    %v943 = vpack.c.b16 %v655, %v631
    %v944 = vpack.c.b16 %v656, %v632
    %v945 = vpack.c.b16 %v657, %v633
    %v946 = vpack.c.b16 %v658, %v634
    %v947 = vpack.c.b16 %v659, %v635
    %v948 = vpack.c.b16 %v660, %v636
    %v949 = vpack.c.b16 %v661, %v637
    %v950 = vpack.c.b16 %v662, %v638
    %v951 = vpack.c.b16 %v663, %v639
    %v952 = vpack.c.b16 %v664, %v640
    %v953 = vpack.c.b16 %v665, %v641
    %v954 = vpack.c.b16 %v666, %v642
    %v955 = vpack.c.b16 %v667, %v643
    %v956 = vpack.c.b16 %v668, %v644
    %v957 = vpack.c.b16 %v669, %v645
    %v958 = vpack.c.b16 %v670, %v646
    %v959 = vpack.c.b16 %v695, %v671
    %v960 = vpack.c.b16 %v696, %v672
    %v961 = vpack.c.b16 %v697, %v673
    %v962 = vpack.c.b16 %v698, %v674
    %v963 = vpack.c.b16 %v699, %v675
    %v964 = vpack.c.b16 %v700, %v676
    %v965 = vpack.c.b16 %v701, %v677
    %v966 = vpack.c.b16 %v702, %v678
    %v967 = vpack.c.b16 %v703, %v679
    %v968 = vpack.c.b16 %v704, %v680
    %v969 = vpack.c.b16 %v705, %v681
    %v970 = vpack.c.b16 %v706, %v682
    %v971 = vpack.c.b16 %v707, %v683
    %v972 = vpack.c.b16 %v708, %v684
    %v973 = vpack.c.b16 %v709, %v685
    %v974 = vpack.c.b16 %v710, %v686
    %v975 = vpack.c.b16 %v711, %v687
    %v976 = vpack.c.b16 %v712, %v688
    %v977 = vpack.c.b16 %v713, %v689
    %v978 = vpack.c.b16 %v714, %v690
    %v979 = vpack.c.b16 %v715, %v691
    %v980 = vpack.c.b16 %v716, %v692
    %v981 = vpack.c.b16 %v717, %v693
    %v982 = vpack.c.b16 %v718, %v694
    %v983 = vpack.c.b16 %v743, %v719
    %v984 = vpack.c.b16 %v744, %v720
    %v985 = vpack.c.b16 %v745, %v721
    %v986 = vpack.c.b16 %v746, %v722
    %v987 = vpack.c.b16 %v747, %v723
    %v988 = vpack.c.b16 %v748, %v724
    %v989 = vpack.c.b16 %v749, %v725
    %v990 = vpack.c.b16 %v750, %v726
    %v991 = vpack.c.b16 %v751, %v727
    %v992 = vpack.c.b16 %v752, %v728
    %v993 = vpack.c.b16 %v753, %v729
    %v994 = vpack.c.b16 %v754, %v730
    %v995 = vpack.c.b16 %v755, %v731
    %v996 = vpack.c.b16 %v756, %v732
    %v997 = vpack.c.b16 %v757, %v733
    %v998 = vpack.c.b16 %v758, %v734
    %v999 = vpack.c.b16 %v759, %v735
    %v1000 = vpack.c.b16 %v760, %v736
    %v1001 = vpack.c.b16 %v761, %v737
    %v1002 = vpack.c.b16 %v762, %v738
    %v1003 = vpack.c.b16 %v763, %v739
    %v1004 = vpack.c.b16 %v764, %v740
    %v1005 = vpack.c.b16 %v765, %v741
    %v1006 = vpack.c.b16 %v766, %v742
    %v1007 = vpack.c.b16 %v791, %v767
    %v1008 = vpack.c.b16 %v792, %v768
    %v1009 = vpack.c.b16 %v793, %v769
    %v1010 = vpack.c.b16 %v794, %v770
    %v1011 = vpack.c.b16 %v795, %v771
    %v1012 = vpack.c.b16 %v796, %v772
    %v1013 = vpack.c.b16 %v797, %v773
    %v1014 = vpack.c.b16 %v798, %v774
    %v1015 = vpack.c.b16 %v799, %v775
    %v1016 = vpack.c.b16 %v800, %v776
    %v1017 = vpack.c.b16 %v801, %v777
    %v1018 = vpack.c.b16 %v802, %v778
    %v1019 = vpack.c.b16 %v803, %v779
    %v1020 = vpack.c.b16 %v804, %v780
    %v1021 = vpack.c.b16 %v805, %v781
    %v1022 = vpack.c.b16 %v806, %v782
    %v1023 = vpack.c.b16 %v807, %v783
    %v1024 = vpack.c.b16 %v808, %v784
    %v1025 = vpack.c.b16 %v809, %v785
    %v1026 = vpack.c.b16 %v810, %v786
    %v1027 = vpack.c.b16 %v811, %v787
    %v1028 = vpack.c.b16 %v812, %v788
    %v1029 = vpack.c.b16 %v813, %v789
    %v1030 = vpack.c.b16 %v814, %v790
    %v1031 = vpack.c.b16 %v839, %v815
    %v1032 = vpack.c.b16 %v840, %v816
    %v1033 = vpack.c.b16 %v841, %v817
    %v1034 = vpack.c.b16 %v842, %v818
    %v1035 = vpack.c.b16 %v843, %v819
    %v1036 = vpack.c.b16 %v844, %v820
    %v1037 = vpack.c.b16 %v845, %v821
    %v1038 = vpack.c.b16 %v846, %v822
    %v1039 = vpack.c.b16 %v847, %v823
    %v1040 = vpack.c.b16 %v848, %v824
    %v1041 = vpack.c.b16 %v849, %v825
    %v1042 = vpack.c.b16 %v850, %v826
    %v1043 = vpack.c.b16 %v851, %v827
    %v1044 = vpack.c.b16 %v852, %v828
    %v1045 = vpack.c.b16 %v853, %v829
    %v1046 = vpack.c.b16 %v854, %v830
    %v1047 = vpack.c.b16 %v855, %v831
    %v1048 = vpack.c.b16 %v856, %v832
    %v1049 = vpack.c.b16 %v857, %v833
    %v1050 = vpack.c.b16 %v858, %v834
    %v1051 = vpack.c.b16 %v859, %v835
    %v1052 = vpack.c.b16 %v860, %v836
    %v1053 = vpack.c.b16 %v861, %v837
    %v1054 = vpack.c.b16 %v862, %v838
    %1247 = vmatprep.subr.bf16.mxu0 %v864
    %1248 = vmatpush1.bf16.msra.mxu0 %v863
    %1249 = vmatprep.subr.bf16.mxu0 %v888
    %1250 = vmatpush1.bf16.msra.mxu0 %v887
    %1251 = vmatprep.subr.bf16.mxu0 %v912
    %1252 = vmatpush1.bf16.msra.mxu0 %v911
    %1253 = vmatprep.subr.bf16.mxu0 %v936
    %1254 = vmatpush1.bf16.msra.mxu0 %v935
    %1255 = vmatprep.subr.bf16.mxu0 %v960
    %1256 = vmatpush1.bf16.msra.mxu0 %v959
    %1257 = vmatprep.subr.bf16.mxu0 %v984
    %1258 = vmatpush1.bf16.msra.mxu0 %v983
    %1259 = vmatprep.subr.bf16.mxu0 %v1008
    %1260 = vmatpush1.bf16.msra.mxu0 %v1007
    %1261 = vmatprep.subr.bf16.mxu0 %v1032
    %1262 = vmatpush1.bf16.msra.mxu0 %v1031
    %1263 = vmatprep.subr.bf16.mxu0 0
    %1264 = vmatpush1.bf16.msra.mxu0 0
    %1265 = vmatprep.subr.bf16.mxu0 0
    %1266 = vmatpush1.bf16.msra.mxu0 0
    %1267 = vmatprep.subr.bf16.mxu0 0
    %1268 = vmatpush1.bf16.msra.mxu0 0
    %1269 = vmatprep.subr.bf16.mxu0 0
    %1270 = vmatpush1.bf16.msra.mxu0 0
    %1271 = vmatprep.subr.bf16.mxu0 0
    %1272 = vmatpush1.bf16.msra.mxu0 0
    %1273 = vmatprep.subr.bf16.mxu0 0
    %1274 = vmatpush1.bf16.msra.mxu0 0
    %1275 = vmatprep.subr.bf16.mxu0 0
    %1276 = vmatpush1.bf16.msra.mxu0 0
    %1277 = vmatprep.subr.bf16.mxu0 0
    %1278 = vmatpush1.bf16.msra.mxu0 0
    %1279 = vmatprep.mubr.bf16.mxu0 0
    %1280 = vmatmul.mubr.bf16.gmra.mrb[0].mxu0 %v279
    %v1281 = vpop.f32.mrb[0].mxu0
    %v1282 = vadd.f32 0.0, %v1281
    %v1283 = vpop.f32.mrb[0].mxu0
    %v1284 = vadd.f32 0.0, %v1283
    %v1285 = vpop.f32.mrb[0].mxu0
    %v1286 = vadd.f32 0.0, %v1285
    %v1287 = vpop.f32.mrb[0].mxu0
    %v1288 = vadd.f32 0.0, %v1287
    %1289 = vmatprep.mubr.bf16.mxu0 0
    %1290 = vmatmul.mubr.bf16.gmra.mrb[0].mxu0 %v280
    %v1291 = vpop.f32.mrb[0].mxu0
    %v1292 = vadd.f32 0.0, %v1291
    %v1293 = vpop.f32.mrb[0].mxu0
    %v1294 = vadd.f32 0.0, %v1293
    %v1295 = vpop.f32.mrb[0].mxu0
    %v1296 = vadd.f32 0.0, %v1295
    %v1297 = vpop.f32.mrb[0].mxu0
    %v1298 = vadd.f32 0.0, %v1297
    %1299 = vmatprep.mubr.bf16.mxu0 0
    %1300 = vmatmul.mubr.bf16.gmra.mrb[0].mxu0 %v281
    %v1301 = vpop.f32.mrb[0].mxu0
    %v1302 = vadd.f32 0.0, %v1301
    %v1303 = vpop.f32.mrb[0].mxu0
    %v1304 = vadd.f32 0.0, %v1303
    %v1305 = vpop.f32.mrb[0].mxu0
    %v1306 = vadd.f32 0.0, %v1305
    %v1307 = vpop.f32.mrb[0].mxu0
    %v1308 = vadd.f32 0.0, %v1307
    %1309 = vmatprep.mubr.bf16.mxu0 0
    %1310 = vmatmul.mubr.bf16.gmra.mrb[0].mxu0 %v282
    %v1311 = vpop.f32.mrb[0].mxu0
    %v1312 = vadd.f32 0.0, %v1311
    %v1313 = vpop.f32.mrb[0].mxu0
    %v1314 = vadd.f32 0.0, %v1313
    %v1315 = vpop.f32.mrb[0].mxu0
    %v1316 = vadd.f32 0.0, %v1315
    %v1317 = vpop.f32.mrb[0].mxu0
    %v1318 = vadd.f32 0.0, %v1317
    %1319 = vdwg.mxu0
    %1320 = vmatprep.subr.bf16.mxu0 %v866
    %1321 = vmatpush1.bf16.msra.mxu0 %v865
    %1322 = vmatprep.subr.bf16.mxu0 %v890
    %1323 = vmatpush1.bf16.msra.mxu0 %v889
    %1324 = vmatprep.subr.bf16.mxu0 %v914
    %1325 = vmatpush1.bf16.msra.mxu0 %v913
    %1326 = vmatprep.subr.bf16.mxu0 %v938
    %1327 = vmatpush1.bf16.msra.mxu0 %v937
    %1328 = vmatprep.subr.bf16.mxu0 %v962
    %1329 = vmatpush1.bf16.msra.mxu0 %v961
    %1330 = vmatprep.subr.bf16.mxu0 %v986
    %1331 = vmatpush1.bf16.msra.mxu0 %v985
    %1332 = vmatprep.subr.bf16.mxu0 %v1010
    %1333 = vmatpush1.bf16.msra.mxu0 %v1009
    %1334 = vmatprep.subr.bf16.mxu0 %v1034
    %1335 = vmatpush1.bf16.msra.mxu0 %v1033
    %1336 = vmatprep.subr.bf16.mxu0 0
    %1337 = vmatpush1.bf16.msra.mxu0 0
    %1338 = vmatprep.subr.bf16.mxu0 0
    %1339 = vmatpush1.bf16.msra.mxu0 0
    %1340 = vmatprep.subr.bf16.mxu0 0
    %1341 = vmatpush1.bf16.msra.mxu0 0
    %1342 = vmatprep.subr.bf16.mxu0 0
    %1343 = vmatpush1.bf16.msra.mxu0 0
    %1344 = vmatprep.subr.bf16.mxu0 0
    %1345 = vmatpush1.bf16.msra.mxu0 0
    %1346 = vmatprep.subr.bf16.mxu0 0
    %1347 = vmatpush1.bf16.msra.mxu0 0
    %1348 = vmatprep.subr.bf16.mxu0 0
    %1349 = vmatpush1.bf16.msra.mxu0 0
    %1350 = vmatprep.subr.bf16.mxu0 0
    %1351 = vmatpush1.bf16.msra.mxu0 0
    %1352 = vmatprep.mubr.bf16.mxu0 0
    %1353 = vmatmul.mubr.bf16.gmra.mrb[0].mxu0 %v279
    %v1354 = vpop.f32.mrb[0].mxu0
    %v1355 = vadd.f32 0.0, %v1354
    %v1356 = vpop.f32.mrb[0].mxu0
    %v1357 = vadd.f32 0.0, %v1356
    %v1358 = vpop.f32.mrb[0].mxu0
    %v1359 = vadd.f32 0.0, %v1358
    %v1360 = vpop.f32.mrb[0].mxu0
    %v1361 = vadd.f32 0.0, %v1360
    %1362 = vmatprep.mubr.bf16.mxu0 0
    %1363 = vmatmul.mubr.bf16.gmra.mrb[0].mxu0 %v280
    %v1364 = vpop.f32.mrb[0].mxu0
    %v1365 = vadd.f32 0.0, %v1364
    %v1366 = vpop.f32.mrb[0].mxu0
    %v1367 = vadd.f32 0.0, %v1366
    %v1368 = vpop.f32.mrb[0].mxu0
    %v1369 = vadd.f32 0.0, %v1368
    %v1370 = vpop.f32.mrb[0].mxu0
    %v1371 = vadd.f32 0.0, %v1370
    %1372 = vmatprep.mubr.bf16.mxu0 0
    %1373 = vmatmul.mubr.bf16.gmra.mrb[0].mxu0 %v281
    %v1374 = vpop.f32.mrb[0].mxu0
    %v1375 = vadd.f32 0.0, %v1374
    %v1376 = vpop.f32.mrb[0].mxu0
    %v1377 = vadd.f32 0.0, %v1376
    %v1378 = vpop.f32.mrb[0].mxu0
    %v1379 = vadd.f32 0.0, %v1378
    %v1380 = vpop.f32.mrb[0].mxu0
    %v1381 = vadd.f32 0.0, %v1380
    %1382 = vmatprep.mubr.bf16.mxu0 0
    %1383 = vmatmul.mubr.bf16.gmra.mrb[0].mxu0 %v282
    %v1384 = vpop.f32.mrb[0].mxu0
    %v1385 = vadd.f32 0.0, %v1384
    %v1386 = vpop.f32.mrb[0].mxu0
    %v1387 = vadd.f32 0.0, %v1386
    %v1388 = vpop.f32.mrb[0].mxu0
    %v1389 = vadd.f32 0.0, %v1388
    %v1390 = vpop.f32.mrb[0].mxu0
    %v1391 = vadd.f32 0.0, %v1390
    %1392 = vdwg.mxu0
    %1393 = vmatprep.subr.bf16.mxu0 %v868
    %1394 = vmatpush1.bf16.msra.mxu0 %v867
    %1395 = vmatprep.subr.bf16.mxu0 %v892
    %1396 = vmatpush1.bf16.msra.mxu0 %v891
    %1397 = vmatprep.subr.bf16.mxu0 %v916
    %1398 = vmatpush1.bf16.msra.mxu0 %v915
    %1399 = vmatprep.subr.bf16.mxu0 %v940
    %1400 = vmatpush1.bf16.msra.mxu0 %v939
    %1401 = vmatprep.subr.bf16.mxu0 %v964
    %1402 = vmatpush1.bf16.msra.mxu0 %v963
    %1403 = vmatprep.subr.bf16.mxu0 %v988
    %1404 = vmatpush1.bf16.msra.mxu0 %v987
    %1405 = vmatprep.subr.bf16.mxu0 %v1012
    %1406 = vmatpush1.bf16.msra.mxu0 %v1011
    %1407 = vmatprep.subr.bf16.mxu0 %v1036
    %1408 = vmatpush1.bf16.msra.mxu0 %v1035
    %1409 = vmatprep.subr.bf16.mxu0 0
    %1410 = vmatpush1.bf16.msra.mxu0 0
    %1411 = vmatprep.subr.bf16.mxu0 0
    %1412 = vmatpush1.bf16.msra.mxu0 0
    %1413 = vmatprep.subr.bf16.mxu0 0
    %1414 = vmatpush1.bf16.msra.mxu0 0
    %1415 = vmatprep.subr.bf16.mxu0 0
    %1416 = vmatpush1.bf16.msra.mxu0 0
    %1417 = vmatprep.subr.bf16.mxu0 0
    %1418 = vmatpush1.bf16.msra.mxu0 0
    %1419 = vmatprep.subr.bf16.mxu0 0
    %1420 = vmatpush1.bf16.msra.mxu0 0
    %1421 = vmatprep.subr.bf16.mxu0 0
    %1422 = vmatpush1.bf16.msra.mxu0 0
    %1423 = vmatprep.subr.bf16.mxu0 0
    %1424 = vmatpush1.bf16.msra.mxu0 0
    %1425 = vmatprep.mubr.bf16.mxu0 0
    %1426 = vmatmul.mubr.bf16.gmra.mrb[0].mxu0 %v279
    %v1427 = vpop.f32.mrb[0].mxu0
    %v1428 = vadd.f32 0.0, %v1427
    %v1429 = vpop.f32.mrb[0].mxu0
    %v1430 = vadd.f32 0.0, %v1429
    %v1431 = vpop.f32.mrb[0].mxu0
    %v1432 = vadd.f32 0.0, %v1431
    %v1433 = vpop.f32.mrb[0].mxu0
    %v1434 = vadd.f32 0.0, %v1433
    %1435 = vmatprep.mubr.bf16.mxu0 0
    %1436 = vmatmul.mubr.bf16.gmra.mrb[0].mxu0 %v280
    %v1437 = vpop.f32.mrb[0].mxu0
    %v1438 = vadd.f32 0.0, %v1437
    %v1439 = vpop.f32.mrb[0].mxu0
    %v1440 = vadd.f32 0.0, %v1439
    %v1441 = vpop.f32.mrb[0].mxu0
    %v1442 = vadd.f32 0.0, %v1441
    %v1443 = vpop.f32.mrb[0].mxu0
    %v1444 = vadd.f32 0.0, %v1443
    %1445 = vmatprep.mubr.bf16.mxu0 0
    %1446 = vmatmul.mubr.bf16.gmra.mrb[0].mxu0 %v281
    %v1447 = vpop.f32.mrb[0].mxu0
    %v1448 = vadd.f32 0.0, %v1447
    %v1449 = vpop.f32.mrb[0].mxu0
    %v1450 = vadd.f32 0.0, %v1449
    %v1451 = vpop.f32.mrb[0].mxu0
    %v1452 = vadd.f32 0.0, %v1451
    %v1453 = vpop.f32.mrb[0].mxu0
    %v1454 = vadd.f32 0.0, %v1453
    %1455 = vmatprep.mubr.bf16.mxu0 0
    %1456 = vmatmul.mubr.bf16.gmra.mrb[0].mxu0 %v282
    %v1457 = vpop.f32.mrb[0].mxu0
    %v1458 = vadd.f32 0.0, %v1457
    %v1459 = vpop.f32.mrb[0].mxu0
    %v1460 = vadd.f32 0.0, %v1459
    %v1461 = vpop.f32.mrb[0].mxu0
    %v1462 = vadd.f32 0.0, %v1461
    %v1463 = vpop.f32.mrb[0].mxu0
    %v1464 = vadd.f32 0.0, %v1463
    %1465 = vdwg.mxu0
    %1466 = vmatprep.subr.bf16.mxu0 %v870
    %1467 = vmatpush1.bf16.msra.mxu0 %v869
    %1468 = vmatprep.subr.bf16.mxu0 %v894
    %1469 = vmatpush1.bf16.msra.mxu0 %v893
    %1470 = vmatprep.subr.bf16.mxu0 %v918
    %1471 = vmatpush1.bf16.msra.mxu0 %v917
    %1472 = vmatprep.subr.bf16.mxu0 %v942
    %1473 = vmatpush1.bf16.msra.mxu0 %v941
    %1474 = vmatprep.subr.bf16.mxu0 %v966
    %1475 = vmatpush1.bf16.msra.mxu0 %v965
    %1476 = vmatprep.subr.bf16.mxu0 %v990
    %1477 = vmatpush1.bf16.msra.mxu0 %v989
    %1478 = vmatprep.subr.bf16.mxu0 %v1014
    %1479 = vmatpush1.bf16.msra.mxu0 %v1013
    %1480 = vmatprep.subr.bf16.mxu0 %v1038
    %1481 = vmatpush1.bf16.msra.mxu0 %v1037
    %1482 = vmatprep.subr.bf16.mxu0 0
    %1483 = vmatpush1.bf16.msra.mxu0 0
    %1484 = vmatprep.subr.bf16.mxu0 0
    %1485 = vmatpush1.bf16.msra.mxu0 0
    %1486 = vmatprep.subr.bf16.mxu0 0
    %1487 = vmatpush1.bf16.msra.mxu0 0
    %1488 = vmatprep.subr.bf16.mxu0 0
    %1489 = vmatpush1.bf16.msra.mxu0 0
    %1490 = vmatprep.subr.bf16.mxu0 0
    %1491 = vmatpush1.bf16.msra.mxu0 0
    %1492 = vmatprep.subr.bf16.mxu0 0
    %1493 = vmatpush1.bf16.msra.mxu0 0
    %1494 = vmatprep.subr.bf16.mxu0 0
    %1495 = vmatpush1.bf16.msra.mxu0 0
    %1496 = vmatprep.subr.bf16.mxu0 0
    %1497 = vmatpush1.bf16.msra.mxu0 0
    %1498 = vmatprep.mubr.bf16.mxu0 0
    %1499 = vmatmul.mubr.bf16.gmra.mrb[0].mxu0 %v279
    %v1500 = vpop.f32.mrb[0].mxu0
    %v1501 = vadd.f32 0.0, %v1500
    %v1502 = vpop.f32.mrb[0].mxu0
    %v1503 = vadd.f32 0.0, %v1502
    %v1504 = vpop.f32.mrb[0].mxu0
    %v1505 = vadd.f32 0.0, %v1504
    %v1506 = vpop.f32.mrb[0].mxu0
    %v1507 = vadd.f32 0.0, %v1506
    %1508 = vmatprep.mubr.bf16.mxu0 0
    %1509 = vmatmul.mubr.bf16.gmra.mrb[0].mxu0 %v280
    %v1510 = vpop.f32.mrb[0].mxu0
    %v1511 = vadd.f32 0.0, %v1510
    %v1512 = vpop.f32.mrb[0].mxu0
    %v1513 = vadd.f32 0.0, %v1512
    %v1514 = vpop.f32.mrb[0].mxu0
    %v1515 = vadd.f32 0.0, %v1514
    %v1516 = vpop.f32.mrb[0].mxu0
    %v1517 = vadd.f32 0.0, %v1516
    %1518 = vmatprep.mubr.bf16.mxu0 0
    %1519 = vmatmul.mubr.bf16.gmra.mrb[0].mxu0 %v281
    %v1520 = vpop.f32.mrb[0].mxu0
    %v1521 = vadd.f32 0.0, %v1520
    %v1522 = vpop.f32.mrb[0].mxu0
    %v1523 = vadd.f32 0.0, %v1522
    %v1524 = vpop.f32.mrb[0].mxu0
    %v1525 = vadd.f32 0.0, %v1524
    %v1526 = vpop.f32.mrb[0].mxu0
    %v1527 = vadd.f32 0.0, %v1526
    %1528 = vmatprep.mubr.bf16.mxu0 0
    %1529 = vmatmul.mubr.bf16.gmra.mrb[0].mxu0 %v282
    %v1530 = vpop.f32.mrb[0].mxu0
    %v1531 = vadd.f32 0.0, %v1530
    %v1532 = vpop.f32.mrb[0].mxu0
    %v1533 = vadd.f32 0.0, %v1532
    %v1534 = vpop.f32.mrb[0].mxu0
    %v1535 = vadd.f32 0.0, %v1534
    %v1536 = vpop.f32.mrb[0].mxu0
    %v1537 = vadd.f32 0.0, %v1536
    %1538 = vdwg.mxu0
    %1539 = vmatprep.subr.bf16.mxu0 %v872
    %1540 = vmatpush1.bf16.msra.mxu0 %v871
    %1541 = vmatprep.subr.bf16.mxu0 %v896
    %1542 = vmatpush1.bf16.msra.mxu0 %v895
    %1543 = vmatprep.subr.bf16.mxu0 %v920
    %1544 = vmatpush1.bf16.msra.mxu0 %v919
    %1545 = vmatprep.subr.bf16.mxu0 %v944
    %1546 = vmatpush1.bf16.msra.mxu0 %v943
    %1547 = vmatprep.subr.bf16.mxu0 %v968
    %1548 = vmatpush1.bf16.msra.mxu0 %v967
    %1549 = vmatprep.subr.bf16.mxu0 %v992
    %1550 = vmatpush1.bf16.msra.mxu0 %v991
    %1551 = vmatprep.subr.bf16.mxu0 %v1016
    %1552 = vmatpush1.bf16.msra.mxu0 %v1015
    %1553 = vmatprep.subr.bf16.mxu0 %v1040
    %1554 = vmatpush1.bf16.msra.mxu0 %v1039
    %1555 = vmatprep.subr.bf16.mxu0 0
    %1556 = vmatpush1.bf16.msra.mxu0 0
    %1557 = vmatprep.subr.bf16.mxu0 0
    %1558 = vmatpush1.bf16.msra.mxu0 0
    %1559 = vmatprep.subr.bf16.mxu0 0
    %1560 = vmatpush1.bf16.msra.mxu0 0
    %1561 = vmatprep.subr.bf16.mxu0 0
    %1562 = vmatpush1.bf16.msra.mxu0 0
    %1563 = vmatprep.subr.bf16.mxu0 0
    %1564 = vmatpush1.bf16.msra.mxu0 0
    %1565 = vmatprep.subr.bf16.mxu0 0
    %1566 = vmatpush1.bf16.msra.mxu0 0
    %1567 = vmatprep.subr.bf16.mxu0 0
    %1568 = vmatpush1.bf16.msra.mxu0 0
    %1569 = vmatprep.subr.bf16.mxu0 0
    %1570 = vmatpush1.bf16.msra.mxu0 0
    %1571 = vmatprep.mubr.bf16.mxu0 0
    %1572 = vmatmul.mubr.bf16.gmra.mrb[0].mxu0 %v279
    %v1573 = vpop.f32.mrb[0].mxu0
    %v1574 = vadd.f32 0.0, %v1573
    %v1575 = vpop.f32.mrb[0].mxu0
    %v1576 = vadd.f32 0.0, %v1575
    %v1577 = vpop.f32.mrb[0].mxu0
    %v1578 = vadd.f32 0.0, %v1577
    %v1579 = vpop.f32.mrb[0].mxu0
    %v1580 = vadd.f32 0.0, %v1579
    %1581 = vmatprep.mubr.bf16.mxu0 0
    %1582 = vmatmul.mubr.bf16.gmra.mrb[0].mxu0 %v280
    %v1583 = vpop.f32.mrb[0].mxu0
    %v1584 = vadd.f32 0.0, %v1583
    %v1585 = vpop.f32.mrb[0].mxu0
    %v1586 = vadd.f32 0.0, %v1585
    %v1587 = vpop.f32.mrb[0].mxu0
    %v1588 = vadd.f32 0.0, %v1587
    %v1589 = vpop.f32.mrb[0].mxu0
    %v1590 = vadd.f32 0.0, %v1589
    %1591 = vmatprep.mubr.bf16.mxu0 0
    %1592 = vmatmul.mubr.bf16.gmra.mrb[0].mxu0 %v281
    %v1593 = vpop.f32.mrb[0].mxu0
    %v1594 = vadd.f32 0.0, %v1593
    %v1595 = vpop.f32.mrb[0].mxu0
    %v1596 = vadd.f32 0.0, %v1595
    %v1597 = vpop.f32.mrb[0].mxu0
    %v1598 = vadd.f32 0.0, %v1597
    %v1599 = vpop.f32.mrb[0].mxu0
    %v1600 = vadd.f32 0.0, %v1599
    %1601 = vmatprep.mubr.bf16.mxu0 0
    %1602 = vmatmul.mubr.bf16.gmra.mrb[0].mxu0 %v282
    %v1603 = vpop.f32.mrb[0].mxu0
    %v1604 = vadd.f32 0.0, %v1603
    %v1605 = vpop.f32.mrb[0].mxu0
    %v1606 = vadd.f32 0.0, %v1605
    %v1607 = vpop.f32.mrb[0].mxu0
    %v1608 = vadd.f32 0.0, %v1607
    %v1609 = vpop.f32.mrb[0].mxu0
    %v1610 = vadd.f32 0.0, %v1609
    %1611 = vdwg.mxu0
    %1612 = vmatprep.subr.bf16.mxu0 %v874
    %1613 = vmatpush1.bf16.msra.mxu0 %v873
    %1614 = vmatprep.subr.bf16.mxu0 %v898
    %1615 = vmatpush1.bf16.msra.mxu0 %v897
    %1616 = vmatprep.subr.bf16.mxu0 %v922
    %1617 = vmatpush1.bf16.msra.mxu0 %v921
    %1618 = vmatprep.subr.bf16.mxu0 %v946
    %1619 = vmatpush1.bf16.msra.mxu0 %v945
    %1620 = vmatprep.subr.bf16.mxu0 %v970
    %1621 = vmatpush1.bf16.msra.mxu0 %v969
    %1622 = vmatprep.subr.bf16.mxu0 %v994
    %1623 = vmatpush1.bf16.msra.mxu0 %v993
    %1624 = vmatprep.subr.bf16.mxu0 %v1018
    %1625 = vmatpush1.bf16.msra.mxu0 %v1017
    %1626 = vmatprep.subr.bf16.mxu0 %v1042
    %1627 = vmatpush1.bf16.msra.mxu0 %v1041
    %1628 = vmatprep.subr.bf16.mxu0 0
    %1629 = vmatpush1.bf16.msra.mxu0 0
    %1630 = vmatprep.subr.bf16.mxu0 0
    %1631 = vmatpush1.bf16.msra.mxu0 0
    %1632 = vmatprep.subr.bf16.mxu0 0
    %1633 = vmatpush1.bf16.msra.mxu0 0
    %1634 = vmatprep.subr.bf16.mxu0 0
    %1635 = vmatpush1.bf16.msra.mxu0 0
    %1636 = vmatprep.subr.bf16.mxu0 0
    %1637 = vmatpush1.bf16.msra.mxu0 0
    %1638 = vmatprep.subr.bf16.mxu0 0
    %1639 = vmatpush1.bf16.msra.mxu0 0
    %1640 = vmatprep.subr.bf16.mxu0 0
    %1641 = vmatpush1.bf16.msra.mxu0 0
    %1642 = vmatprep.subr.bf16.mxu0 0
    %1643 = vmatpush1.bf16.msra.mxu0 0
    %1644 = vmatprep.mubr.bf16.mxu0 0
    %1645 = vmatmul.mubr.bf16.gmra.mrb[0].mxu0 %v279
    %v1646 = vpop.f32.mrb[0].mxu0
    %v1647 = vadd.f32 0.0, %v1646
    %v1648 = vpop.f32.mrb[0].mxu0
    %v1649 = vadd.f32 0.0, %v1648
    %v1650 = vpop.f32.mrb[0].mxu0
    %v1651 = vadd.f32 0.0, %v1650
    %v1652 = vpop.f32.mrb[0].mxu0
    %v1653 = vadd.f32 0.0, %v1652
    %1654 = vmatprep.mubr.bf16.mxu0 0
    %1655 = vmatmul.mubr.bf16.gmra.mrb[0].mxu0 %v280
    %v1656 = vpop.f32.mrb[0].mxu0
    %v1657 = vadd.f32 0.0, %v1656
    %v1658 = vpop.f32.mrb[0].mxu0
    %v1659 = vadd.f32 0.0, %v1658
    %v1660 = vpop.f32.mrb[0].mxu0
    %v1661 = vadd.f32 0.0, %v1660
    %v1662 = vpop.f32.mrb[0].mxu0
    %v1663 = vadd.f32 0.0, %v1662
    %1664 = vmatprep.mubr.bf16.mxu0 0
    %1665 = vmatmul.mubr.bf16.gmra.mrb[0].mxu0 %v281
    %v1666 = vpop.f32.mrb[0].mxu0
    %v1667 = vadd.f32 0.0, %v1666
    %v1668 = vpop.f32.mrb[0].mxu0
    %v1669 = vadd.f32 0.0, %v1668
    %v1670 = vpop.f32.mrb[0].mxu0
    %v1671 = vadd.f32 0.0, %v1670
    %v1672 = vpop.f32.mrb[0].mxu0
    %v1673 = vadd.f32 0.0, %v1672
    %1674 = vmatprep.mubr.bf16.mxu0 0
    %1675 = vmatmul.mubr.bf16.gmra.mrb[0].mxu0 %v282
    %v1676 = vpop.f32.mrb[0].mxu0
    %v1677 = vadd.f32 0.0, %v1676
    %v1678 = vpop.f32.mrb[0].mxu0
    %v1679 = vadd.f32 0.0, %v1678
    %v1680 = vpop.f32.mrb[0].mxu0
    %v1681 = vadd.f32 0.0, %v1680
    %v1682 = vpop.f32.mrb[0].mxu0
    %v1683 = vadd.f32 0.0, %v1682
    %1684 = vdwg.mxu0
    %1685 = vmatprep.subr.bf16.mxu0 %v876
    %1686 = vmatpush1.bf16.msra.mxu0 %v875
    %1687 = vmatprep.subr.bf16.mxu0 %v900
    %1688 = vmatpush1.bf16.msra.mxu0 %v899
    %1689 = vmatprep.subr.bf16.mxu0 %v924
    %1690 = vmatpush1.bf16.msra.mxu0 %v923
    %1691 = vmatprep.subr.bf16.mxu0 %v948
    %1692 = vmatpush1.bf16.msra.mxu0 %v947
    %1693 = vmatprep.subr.bf16.mxu0 %v972
    %1694 = vmatpush1.bf16.msra.mxu0 %v971
    %1695 = vmatprep.subr.bf16.mxu0 %v996
    %1696 = vmatpush1.bf16.msra.mxu0 %v995
    %1697 = vmatprep.subr.bf16.mxu0 %v1020
    %1698 = vmatpush1.bf16.msra.mxu0 %v1019
    %1699 = vmatprep.subr.bf16.mxu0 %v1044
    %1700 = vmatpush1.bf16.msra.mxu0 %v1043
    %1701 = vmatprep.subr.bf16.mxu0 0
    %1702 = vmatpush1.bf16.msra.mxu0 0
    %1703 = vmatprep.subr.bf16.mxu0 0
    %1704 = vmatpush1.bf16.msra.mxu0 0
    %1705 = vmatprep.subr.bf16.mxu0 0
    %1706 = vmatpush1.bf16.msra.mxu0 0
    %1707 = vmatprep.subr.bf16.mxu0 0
    %1708 = vmatpush1.bf16.msra.mxu0 0
    %1709 = vmatprep.subr.bf16.mxu0 0
    %1710 = vmatpush1.bf16.msra.mxu0 0
    %1711 = vmatprep.subr.bf16.mxu0 0
    %1712 = vmatpush1.bf16.msra.mxu0 0
    %1713 = vmatprep.subr.bf16.mxu0 0
    %1714 = vmatpush1.bf16.msra.mxu0 0
    %1715 = vmatprep.subr.bf16.mxu0 0
    %1716 = vmatpush1.bf16.msra.mxu0 0
    %1717 = vmatprep.mubr.bf16.mxu0 0
    %1718 = vmatmul.mubr.bf16.gmra.mrb[0].mxu0 %v279
    %v1719 = vpop.f32.mrb[0].mxu0
    %v1720 = vadd.f32 0.0, %v1719
    %v1721 = vpop.f32.mrb[0].mxu0
    %v1722 = vadd.f32 0.0, %v1721
    %v1723 = vpop.f32.mrb[0].mxu0
    %v1724 = vadd.f32 0.0, %v1723
    %v1725 = vpop.f32.mrb[0].mxu0
    %v1726 = vadd.f32 0.0, %v1725
    %1727 = vmatprep.mubr.bf16.mxu0 0
    %1728 = vmatmul.mubr.bf16.gmra.mrb[0].mxu0 %v280
    %v1729 = vpop.f32.mrb[0].mxu0
    %v1730 = vadd.f32 0.0, %v1729
    %v1731 = vpop.f32.mrb[0].mxu0
    %v1732 = vadd.f32 0.0, %v1731
    %v1733 = vpop.f32.mrb[0].mxu0
    %v1734 = vadd.f32 0.0, %v1733
    %v1735 = vpop.f32.mrb[0].mxu0
    %v1736 = vadd.f32 0.0, %v1735
    %1737 = vmatprep.mubr.bf16.mxu0 0
    %1738 = vmatmul.mubr.bf16.gmra.mrb[0].mxu0 %v281
    %v1739 = vpop.f32.mrb[0].mxu0
    %v1740 = vadd.f32 0.0, %v1739
    %v1741 = vpop.f32.mrb[0].mxu0
    %v1742 = vadd.f32 0.0, %v1741
    %v1743 = vpop.f32.mrb[0].mxu0
    %v1744 = vadd.f32 0.0, %v1743
    %v1745 = vpop.f32.mrb[0].mxu0
    %v1746 = vadd.f32 0.0, %v1745
    %1747 = vmatprep.mubr.bf16.mxu0 0
    %1748 = vmatmul.mubr.bf16.gmra.mrb[0].mxu0 %v282
    %v1749 = vpop.f32.mrb[0].mxu0
    %v1750 = vadd.f32 0.0, %v1749
    %v1751 = vpop.f32.mrb[0].mxu0
    %v1752 = vadd.f32 0.0, %v1751
    %v1753 = vpop.f32.mrb[0].mxu0
    %v1754 = vadd.f32 0.0, %v1753
    %v1755 = vpop.f32.mrb[0].mxu0
    %v1756 = vadd.f32 0.0, %v1755
    %1757 = vdwg.mxu0
    %1758 = vmatprep.subr.bf16.mxu0 %v878
    %1759 = vmatpush1.bf16.msra.mxu0 %v877
    %1760 = vmatprep.subr.bf16.mxu0 %v902
    %1761 = vmatpush1.bf16.msra.mxu0 %v901
    %1762 = vmatprep.subr.bf16.mxu0 %v926
    %1763 = vmatpush1.bf16.msra.mxu0 %v925
    %1764 = vmatprep.subr.bf16.mxu0 %v950
    %1765 = vmatpush1.bf16.msra.mxu0 %v949
    %1766 = vmatprep.subr.bf16.mxu0 %v974
    %1767 = vmatpush1.bf16.msra.mxu0 %v973
    %1768 = vmatprep.subr.bf16.mxu0 %v998
    %1769 = vmatpush1.bf16.msra.mxu0 %v997
    %1770 = vmatprep.subr.bf16.mxu0 %v1022
    %1771 = vmatpush1.bf16.msra.mxu0 %v1021
    %1772 = vmatprep.subr.bf16.mxu0 %v1046
    %1773 = vmatpush1.bf16.msra.mxu0 %v1045
    %1774 = vmatprep.subr.bf16.mxu0 0
    %1775 = vmatpush1.bf16.msra.mxu0 0
    %1776 = vmatprep.subr.bf16.mxu0 0
    %1777 = vmatpush1.bf16.msra.mxu0 0
    %1778 = vmatprep.subr.bf16.mxu0 0
    %1779 = vmatpush1.bf16.msra.mxu0 0
    %1780 = vmatprep.subr.bf16.mxu0 0
    %1781 = vmatpush1.bf16.msra.mxu0 0
    %1782 = vmatprep.subr.bf16.mxu0 0
    %1783 = vmatpush1.bf16.msra.mxu0 0
    %1784 = vmatprep.subr.bf16.mxu0 0
    %1785 = vmatpush1.bf16.msra.mxu0 0
    %1786 = vmatprep.subr.bf16.mxu0 0
    %1787 = vmatpush1.bf16.msra.mxu0 0
    %1788 = vmatprep.subr.bf16.mxu0 0
    %1789 = vmatpush1.bf16.msra.mxu0 0
    %1790 = vmatprep.mubr.bf16.mxu0 0
    %1791 = vmatmul.mubr.bf16.gmra.mrb[0].mxu0 %v279
    %v1792 = vpop.f32.mrb[0].mxu0
    %v1793 = vadd.f32 0.0, %v1792
    %v1794 = vpop.f32.mrb[0].mxu0
    %v1795 = vadd.f32 0.0, %v1794
    %v1796 = vpop.f32.mrb[0].mxu0
    %v1797 = vadd.f32 0.0, %v1796
    %v1798 = vpop.f32.mrb[0].mxu0
    %v1799 = vadd.f32 0.0, %v1798
    %1800 = vmatprep.mubr.bf16.mxu0 0
    %1801 = vmatmul.mubr.bf16.gmra.mrb[0].mxu0 %v280
    %v1802 = vpop.f32.mrb[0].mxu0
    %v1803 = vadd.f32 0.0, %v1802
    %v1804 = vpop.f32.mrb[0].mxu0
    %v1805 = vadd.f32 0.0, %v1804
    %v1806 = vpop.f32.mrb[0].mxu0
    %v1807 = vadd.f32 0.0, %v1806
    %v1808 = vpop.f32.mrb[0].mxu0
    %v1809 = vadd.f32 0.0, %v1808
    %1810 = vmatprep.mubr.bf16.mxu0 0
    %1811 = vmatmul.mubr.bf16.gmra.mrb[0].mxu0 %v281
    %v1812 = vpop.f32.mrb[0].mxu0
    %v1813 = vadd.f32 0.0, %v1812
    %v1814 = vpop.f32.mrb[0].mxu0
    %v1815 = vadd.f32 0.0, %v1814
    %v1816 = vpop.f32.mrb[0].mxu0
    %v1817 = vadd.f32 0.0, %v1816
    %v1818 = vpop.f32.mrb[0].mxu0
    %v1819 = vadd.f32 0.0, %v1818
    %1820 = vmatprep.mubr.bf16.mxu0 0
    %1821 = vmatmul.mubr.bf16.gmra.mrb[0].mxu0 %v282
    %v1822 = vpop.f32.mrb[0].mxu0
    %v1823 = vadd.f32 0.0, %v1822
    %v1824 = vpop.f32.mrb[0].mxu0
    %v1825 = vadd.f32 0.0, %v1824
    %v1826 = vpop.f32.mrb[0].mxu0
    %v1827 = vadd.f32 0.0, %v1826
    %v1828 = vpop.f32.mrb[0].mxu0
    %v1829 = vadd.f32 0.0, %v1828
    %1830 = vdwg.mxu0
    %1831 = vmatprep.subr.bf16.mxu0 %v880
    %1832 = vmatpush1.bf16.msra.mxu0 %v879
    %1833 = vmatprep.subr.bf16.mxu0 %v904
    %1834 = vmatpush1.bf16.msra.mxu0 %v903
    %1835 = vmatprep.subr.bf16.mxu0 %v928
    %1836 = vmatpush1.bf16.msra.mxu0 %v927
    %1837 = vmatprep.subr.bf16.mxu0 %v952
    %1838 = vmatpush1.bf16.msra.mxu0 %v951
    %1839 = vmatprep.subr.bf16.mxu0 %v976
    %1840 = vmatpush1.bf16.msra.mxu0 %v975
    %1841 = vmatprep.subr.bf16.mxu0 %v1000
    %1842 = vmatpush1.bf16.msra.mxu0 %v999
    %1843 = vmatprep.subr.bf16.mxu0 %v1024
    %1844 = vmatpush1.bf16.msra.mxu0 %v1023
    %1845 = vmatprep.subr.bf16.mxu0 %v1048
    %1846 = vmatpush1.bf16.msra.mxu0 %v1047
    %1847 = vmatprep.subr.bf16.mxu0 0
    %1848 = vmatpush1.bf16.msra.mxu0 0
    %1849 = vmatprep.subr.bf16.mxu0 0
    %1850 = vmatpush1.bf16.msra.mxu0 0
    %1851 = vmatprep.subr.bf16.mxu0 0
    %1852 = vmatpush1.bf16.msra.mxu0 0
    %1853 = vmatprep.subr.bf16.mxu0 0
    %1854 = vmatpush1.bf16.msra.mxu0 0
    %1855 = vmatprep.subr.bf16.mxu0 0
    %1856 = vmatpush1.bf16.msra.mxu0 0
    %1857 = vmatprep.subr.bf16.mxu0 0
    %1858 = vmatpush1.bf16.msra.mxu0 0
    %1859 = vmatprep.subr.bf16.mxu0 0
    %1860 = vmatpush1.bf16.msra.mxu0 0
    %1861 = vmatprep.subr.bf16.mxu0 0
    %1862 = vmatpush1.bf16.msra.mxu0 0
    %1863 = vmatprep.mubr.bf16.mxu0 0
    %1864 = vmatmul.mubr.bf16.gmra.mrb[0].mxu0 %v279
    %v1865 = vpop.f32.mrb[0].mxu0
    %v1866 = vadd.f32 0.0, %v1865
    %v1867 = vpop.f32.mrb[0].mxu0
    %v1868 = vadd.f32 0.0, %v1867
    %v1869 = vpop.f32.mrb[0].mxu0
    %v1870 = vadd.f32 0.0, %v1869
    %v1871 = vpop.f32.mrb[0].mxu0
    %v1872 = vadd.f32 0.0, %v1871
    %1873 = vmatprep.mubr.bf16.mxu0 0
    %1874 = vmatmul.mubr.bf16.gmra.mrb[0].mxu0 %v280
    %v1875 = vpop.f32.mrb[0].mxu0
    %v1876 = vadd.f32 0.0, %v1875
    %v1877 = vpop.f32.mrb[0].mxu0
    %v1878 = vadd.f32 0.0, %v1877
    %v1879 = vpop.f32.mrb[0].mxu0
    %v1880 = vadd.f32 0.0, %v1879
    %v1881 = vpop.f32.mrb[0].mxu0
    %v1882 = vadd.f32 0.0, %v1881
    %1883 = vmatprep.mubr.bf16.mxu0 0
    %1884 = vmatmul.mubr.bf16.gmra.mrb[0].mxu0 %v281
    %v1885 = vpop.f32.mrb[0].mxu0
    %v1886 = vadd.f32 0.0, %v1885
    %v1887 = vpop.f32.mrb[0].mxu0
    %v1888 = vadd.f32 0.0, %v1887
    %v1889 = vpop.f32.mrb[0].mxu0
    %v1890 = vadd.f32 0.0, %v1889
    %v1891 = vpop.f32.mrb[0].mxu0
    %v1892 = vadd.f32 0.0, %v1891
    %1893 = vmatprep.mubr.bf16.mxu0 0
    %1894 = vmatmul.mubr.bf16.gmra.mrb[0].mxu0 %v282
    %v1895 = vpop.f32.mrb[0].mxu0
    %v1896 = vadd.f32 0.0, %v1895
    %v1897 = vpop.f32.mrb[0].mxu0
    %v1898 = vadd.f32 0.0, %v1897
    %v1899 = vpop.f32.mrb[0].mxu0
    %v1900 = vadd.f32 0.0, %v1899
    %v1901 = vpop.f32.mrb[0].mxu0
    %v1902 = vadd.f32 0.0, %v1901
    %1903 = vdwg.mxu0
    %1904 = vmatprep.subr.bf16.mxu0 %v882
    %1905 = vmatpush1.bf16.msra.mxu0 %v881
    %1906 = vmatprep.subr.bf16.mxu0 %v906
    %1907 = vmatpush1.bf16.msra.mxu0 %v905
    %1908 = vmatprep.subr.bf16.mxu0 %v930
    %1909 = vmatpush1.bf16.msra.mxu0 %v929
    %1910 = vmatprep.subr.bf16.mxu0 %v954
    %1911 = vmatpush1.bf16.msra.mxu0 %v953
    %1912 = vmatprep.subr.bf16.mxu0 %v978
    %1913 = vmatpush1.bf16.msra.mxu0 %v977
    %1914 = vmatprep.subr.bf16.mxu0 %v1002
    %1915 = vmatpush1.bf16.msra.mxu0 %v1001
    %1916 = vmatprep.subr.bf16.mxu0 %v1026
    %1917 = vmatpush1.bf16.msra.mxu0 %v1025
    %1918 = vmatprep.subr.bf16.mxu0 %v1050
    %1919 = vmatpush1.bf16.msra.mxu0 %v1049
    %1920 = vmatprep.subr.bf16.mxu0 0
    %1921 = vmatpush1.bf16.msra.mxu0 0
    %1922 = vmatprep.subr.bf16.mxu0 0
    %1923 = vmatpush1.bf16.msra.mxu0 0
    %1924 = vmatprep.subr.bf16.mxu0 0
    %1925 = vmatpush1.bf16.msra.mxu0 0
    %1926 = vmatprep.subr.bf16.mxu0 0
    %1927 = vmatpush1.bf16.msra.mxu0 0
    %1928 = vmatprep.subr.bf16.mxu0 0
    %1929 = vmatpush1.bf16.msra.mxu0 0
    %1930 = vmatprep.subr.bf16.mxu0 0
    %1931 = vmatpush1.bf16.msra.mxu0 0
    %1932 = vmatprep.subr.bf16.mxu0 0
    %1933 = vmatpush1.bf16.msra.mxu0 0
    %1934 = vmatprep.subr.bf16.mxu0 0
    %1935 = vmatpush1.bf16.msra.mxu0 0
    %1936 = vmatprep.mubr.bf16.mxu0 0
    %1937 = vmatmul.mubr.bf16.gmra.mrb[0].mxu0 %v279
    %v1938 = vpop.f32.mrb[0].mxu0
    %v1939 = vadd.f32 0.0, %v1938
    %v1940 = vpop.f32.mrb[0].mxu0
    %v1941 = vadd.f32 0.0, %v1940
    %v1942 = vpop.f32.mrb[0].mxu0
    %v1943 = vadd.f32 0.0, %v1942
    %v1944 = vpop.f32.mrb[0].mxu0
    %v1945 = vadd.f32 0.0, %v1944
    %1946 = vmatprep.mubr.bf16.mxu0 0
    %1947 = vmatmul.mubr.bf16.gmra.mrb[0].mxu0 %v280
    %v1948 = vpop.f32.mrb[0].mxu0
    %v1949 = vadd.f32 0.0, %v1948
    %v1950 = vpop.f32.mrb[0].mxu0
    %v1951 = vadd.f32 0.0, %v1950
    %v1952 = vpop.f32.mrb[0].mxu0
    %v1953 = vadd.f32 0.0, %v1952
    %v1954 = vpop.f32.mrb[0].mxu0
    %v1955 = vadd.f32 0.0, %v1954
    %1956 = vmatprep.mubr.bf16.mxu0 0
    %1957 = vmatmul.mubr.bf16.gmra.mrb[0].mxu0 %v281
    %v1958 = vpop.f32.mrb[0].mxu0
    %v1959 = vadd.f32 0.0, %v1958
    %v1960 = vpop.f32.mrb[0].mxu0
    %v1961 = vadd.f32 0.0, %v1960
    %v1962 = vpop.f32.mrb[0].mxu0
    %v1963 = vadd.f32 0.0, %v1962
    %v1964 = vpop.f32.mrb[0].mxu0
    %v1965 = vadd.f32 0.0, %v1964
    %1966 = vmatprep.mubr.bf16.mxu0 0
    %1967 = vmatmul.mubr.bf16.gmra.mrb[0].mxu0 %v282
    %v1968 = vpop.f32.mrb[0].mxu0
    %v1969 = vadd.f32 0.0, %v1968
    %v1970 = vpop.f32.mrb[0].mxu0
    %v1971 = vadd.f32 0.0, %v1970
    %v1972 = vpop.f32.mrb[0].mxu0
    %v1973 = vadd.f32 0.0, %v1972
    %v1974 = vpop.f32.mrb[0].mxu0
    %v1975 = vadd.f32 0.0, %v1974
    %1976 = vdwg.mxu0
    %1977 = vmatprep.subr.bf16.mxu0 %v884
    %1978 = vmatpush1.bf16.msra.mxu0 %v883
    %1979 = vmatprep.subr.bf16.mxu0 %v908
    %1980 = vmatpush1.bf16.msra.mxu0 %v907
    %1981 = vmatprep.subr.bf16.mxu0 %v932
    %1982 = vmatpush1.bf16.msra.mxu0 %v931
    %1983 = vmatprep.subr.bf16.mxu0 %v956
    %1984 = vmatpush1.bf16.msra.mxu0 %v955
    %1985 = vmatprep.subr.bf16.mxu0 %v980
    %1986 = vmatpush1.bf16.msra.mxu0 %v979
    %1987 = vmatprep.subr.bf16.mxu0 %v1004
    %1988 = vmatpush1.bf16.msra.mxu0 %v1003
    %1989 = vmatprep.subr.bf16.mxu0 %v1028
    %1990 = vmatpush1.bf16.msra.mxu0 %v1027
    %1991 = vmatprep.subr.bf16.mxu0 %v1052
    %1992 = vmatpush1.bf16.msra.mxu0 %v1051
    %1993 = vmatprep.subr.bf16.mxu0 0
    %1994 = vmatpush1.bf16.msra.mxu0 0
    %1995 = vmatprep.subr.bf16.mxu0 0
    %1996 = vmatpush1.bf16.msra.mxu0 0
    %1997 = vmatprep.subr.bf16.mxu0 0
    %1998 = vmatpush1.bf16.msra.mxu0 0
    %1999 = vmatprep.subr.bf16.mxu0 0
    %2000 = vmatpush1.bf16.msra.mxu0 0
    %2001 = vmatprep.subr.bf16.mxu0 0
    %2002 = vmatpush1.bf16.msra.mxu0 0
    %2003 = vmatprep.subr.bf16.mxu0 0
    %2004 = vmatpush1.bf16.msra.mxu0 0
    %2005 = vmatprep.subr.bf16.mxu0 0
    %2006 = vmatpush1.bf16.msra.mxu0 0
    %2007 = vmatprep.subr.bf16.mxu0 0
    %2008 = vmatpush1.bf16.msra.mxu0 0
    %2009 = vmatprep.mubr.bf16.mxu0 0
    %2010 = vmatmul.mubr.bf16.gmra.mrb[0].mxu0 %v279
    %v2011 = vpop.f32.mrb[0].mxu0
    %v2012 = vadd.f32 0.0, %v2011
    %v2013 = vpop.f32.mrb[0].mxu0
    %v2014 = vadd.f32 0.0, %v2013
    %v2015 = vpop.f32.mrb[0].mxu0
    %v2016 = vadd.f32 0.0, %v2015
    %v2017 = vpop.f32.mrb[0].mxu0
    %v2018 = vadd.f32 0.0, %v2017
    %2019 = vmatprep.mubr.bf16.mxu0 0
    %2020 = vmatmul.mubr.bf16.gmra.mrb[0].mxu0 %v280
    %v2021 = vpop.f32.mrb[0].mxu0
    %v2022 = vadd.f32 0.0, %v2021
    %v2023 = vpop.f32.mrb[0].mxu0
    %v2024 = vadd.f32 0.0, %v2023
    %v2025 = vpop.f32.mrb[0].mxu0
    %v2026 = vadd.f32 0.0, %v2025
    %v2027 = vpop.f32.mrb[0].mxu0
    %v2028 = vadd.f32 0.0, %v2027
    %2029 = vmatprep.mubr.bf16.mxu0 0
    %2030 = vmatmul.mubr.bf16.gmra.mrb[0].mxu0 %v281
    %v2031 = vpop.f32.mrb[0].mxu0
    %v2032 = vadd.f32 0.0, %v2031
    %v2033 = vpop.f32.mrb[0].mxu0
    %v2034 = vadd.f32 0.0, %v2033
    %v2035 = vpop.f32.mrb[0].mxu0
    %v2036 = vadd.f32 0.0, %v2035
    %v2037 = vpop.f32.mrb[0].mxu0
    %v2038 = vadd.f32 0.0, %v2037
    %2039 = vmatprep.mubr.bf16.mxu0 0
    %2040 = vmatmul.mubr.bf16.gmra.mrb[0].mxu0 %v282
    %v2041 = vpop.f32.mrb[0].mxu0
    %v2042 = vadd.f32 0.0, %v2041
    %v2043 = vpop.f32.mrb[0].mxu0
    %v2044 = vadd.f32 0.0, %v2043
    %v2045 = vpop.f32.mrb[0].mxu0
    %v2046 = vadd.f32 0.0, %v2045
    %v2047 = vpop.f32.mrb[0].mxu0
    %v2048 = vadd.f32 0.0, %v2047
    %2049 = vdwg.mxu0
    %2050 = vmatprep.subr.bf16.mxu0 %v886
    %2051 = vmatpush1.bf16.msra.mxu0 %v885
    %2052 = vmatprep.subr.bf16.mxu0 %v910
    %2053 = vmatpush1.bf16.msra.mxu0 %v909
    %2054 = vmatprep.subr.bf16.mxu0 %v934
    %2055 = vmatpush1.bf16.msra.mxu0 %v933
    %2056 = vmatprep.subr.bf16.mxu0 %v958
    %2057 = vmatpush1.bf16.msra.mxu0 %v957
    %2058 = vmatprep.subr.bf16.mxu0 %v982
    %2059 = vmatpush1.bf16.msra.mxu0 %v981
    %2060 = vmatprep.subr.bf16.mxu0 %v1006
    %2061 = vmatpush1.bf16.msra.mxu0 %v1005
    %2062 = vmatprep.subr.bf16.mxu0 %v1030
    %2063 = vmatpush1.bf16.msra.mxu0 %v1029
    %2064 = vmatprep.subr.bf16.mxu0 %v1054
    %2065 = vmatpush1.bf16.msra.mxu0 %v1053
    %2066 = vmatprep.subr.bf16.mxu0 0
    %2067 = vmatpush1.bf16.msra.mxu0 0
    %2068 = vmatprep.subr.bf16.mxu0 0
    %2069 = vmatpush1.bf16.msra.mxu0 0
    %2070 = vmatprep.subr.bf16.mxu0 0
    %2071 = vmatpush1.bf16.msra.mxu0 0
    %2072 = vmatprep.subr.bf16.mxu0 0
    %2073 = vmatpush1.bf16.msra.mxu0 0
    %2074 = vmatprep.subr.bf16.mxu0 0
    %2075 = vmatpush1.bf16.msra.mxu0 0
    %2076 = vmatprep.subr.bf16.mxu0 0
    %2077 = vmatpush1.bf16.msra.mxu0 0
    %2078 = vmatprep.subr.bf16.mxu0 0
    %2079 = vmatpush1.bf16.msra.mxu0 0
    %2080 = vmatprep.subr.bf16.mxu0 0
    %2081 = vmatpush1.bf16.msra.mxu0 0
    %2082 = vmatprep.mubr.bf16.mxu0 0
    %2083 = vmatmul.mubr.bf16.gmra.mrb[0].mxu0 %v279
    %v2084 = vpop.f32.mrb[0].mxu0
    %v2085 = vadd.f32 0.0, %v2084
    %v2086 = vpop.f32.mrb[0].mxu0
    %v2087 = vadd.f32 0.0, %v2086
    %v2088 = vpop.f32.mrb[0].mxu0
    %v2089 = vadd.f32 0.0, %v2088
    %v2090 = vpop.f32.mrb[0].mxu0
    %v2091 = vadd.f32 0.0, %v2090
    %2092 = vmatprep.mubr.bf16.mxu0 0
    %2093 = vmatmul.mubr.bf16.gmra.mrb[0].mxu0 %v280
    %v2094 = vpop.f32.mrb[0].mxu0
    %v2095 = vadd.f32 0.0, %v2094
    %v2096 = vpop.f32.mrb[0].mxu0
    %v2097 = vadd.f32 0.0, %v2096
    %v2098 = vpop.f32.mrb[0].mxu0
    %v2099 = vadd.f32 0.0, %v2098
    %v2100 = vpop.f32.mrb[0].mxu0
    %v2101 = vadd.f32 0.0, %v2100
    %2102 = vmatprep.mubr.bf16.mxu0 0
    %2103 = vmatmul.mubr.bf16.gmra.mrb[0].mxu0 %v281
    %v2104 = vpop.f32.mrb[0].mxu0
    %v2105 = vadd.f32 0.0, %v2104
    %v2106 = vpop.f32.mrb[0].mxu0
    %v2107 = vadd.f32 0.0, %v2106
    %v2108 = vpop.f32.mrb[0].mxu0
    %v2109 = vadd.f32 0.0, %v2108
    %v2110 = vpop.f32.mrb[0].mxu0
    %v2111 = vadd.f32 0.0, %v2110
    %2112 = vmatprep.mubr.bf16.mxu0 0
    %2113 = vmatmul.mubr.bf16.gmra.mrb[0].mxu0 %v282
    %v2114 = vpop.f32.mrb[0].mxu0
    %v2115 = vadd.f32 0.0, %v2114
    %v2116 = vpop.f32.mrb[0].mxu0
    %v2117 = vadd.f32 0.0, %v2116
    %v2118 = vpop.f32.mrb[0].mxu0
    %v2119 = vadd.f32 0.0, %v2118
    %v2120 = vpop.f32.mrb[0].mxu0
    %v2121 = vadd.f32 0.0, %v2120
    %2122 = vdwg.mxu0
    %vm2139 = vcmask 1046528
    %v2140 = vrot.slane %v1355, 1
    %v2141 = vrot.slane %v1359, 1
    %v2142 = vsel %vm2139, %v2140, %v2141
    %v2143 = vrot.slane %v1357, 1
    %v2144 = vrot.slane %v1361, 1
    %v2145 = vsel %vm2139, %v2143, %v2144
    %v2146 = vrot.slane %v1365, 1
    %v2147 = vrot.slane %v1369, 1
    %v2148 = vsel %vm2139, %v2146, %v2147
    %v2149 = vrot.slane %v1367, 1
    %v2150 = vrot.slane %v1371, 1
    %v2151 = vsel %vm2139, %v2149, %v2150
    %v2152 = vrot.slane %v1375, 1
    %v2153 = vrot.slane %v1379, 1
    %v2154 = vsel %vm2139, %v2152, %v2153
    %v2155 = vrot.slane %v1377, 1
    %v2156 = vrot.slane %v1381, 1
    %v2157 = vsel %vm2139, %v2155, %v2156
    %v2158 = vrot.slane %v1385, 1
    %v2159 = vrot.slane %v1389, 1
    %v2160 = vsel %vm2139, %v2158, %v2159
    %v2161 = vrot.slane %v1387, 1
    %v2162 = vrot.slane %v1391, 1
    %v2163 = vsel %vm2139, %v2161, %v2162
    %v2180 = vadd.f32 %v1282, %v2142
    %v2181 = vadd.f32 %v1284, %v2145
    %v2182 = vadd.f32 %v1286, %v2141
    %v2183 = vadd.f32 %v1288, %v2144
    %v2184 = vadd.f32 %v1292, %v2148
    %v2185 = vadd.f32 %v1294, %v2151
    %v2186 = vadd.f32 %v1296, %v2147
    %v2187 = vadd.f32 %v1298, %v2150
    %v2188 = vadd.f32 %v1302, %v2154
    %v2189 = vadd.f32 %v1304, %v2157
    %v2190 = vadd.f32 %v1306, %v2153
    %v2191 = vadd.f32 %v1308, %v2156
    %v2192 = vadd.f32 %v1312, %v2160
    %v2193 = vadd.f32 %v1314, %v2163
    %v2194 = vadd.f32 %v1316, %v2159
    %v2195 = vadd.f32 %v1318, %v2162
    %vm2212 = vcmask 1045504
    %v2213 = vrot.slane %v1428, 2
    %v2214 = vrot.slane %v1432, 2
    %v2215 = vsel %vm2212, %v2213, %v2214
    %v2216 = vrot.slane %v1430, 2
    %v2217 = vrot.slane %v1434, 2
    %v2218 = vsel %vm2212, %v2216, %v2217
    %v2219 = vrot.slane %v1438, 2
    %v2220 = vrot.slane %v1442, 2
    %v2221 = vsel %vm2212, %v2219, %v2220
    %v2222 = vrot.slane %v1440, 2
    %v2223 = vrot.slane %v1444, 2
    %v2224 = vsel %vm2212, %v2222, %v2223
    %v2225 = vrot.slane %v1448, 2
    %v2226 = vrot.slane %v1452, 2
    %v2227 = vsel %vm2212, %v2225, %v2226
    %v2228 = vrot.slane %v1450, 2
    %v2229 = vrot.slane %v1454, 2
    %v2230 = vsel %vm2212, %v2228, %v2229
    %v2231 = vrot.slane %v1458, 2
    %v2232 = vrot.slane %v1462, 2
    %v2233 = vsel %vm2212, %v2231, %v2232
    %v2234 = vrot.slane %v1460, 2
    %v2235 = vrot.slane %v1464, 2
    %v2236 = vsel %vm2212, %v2234, %v2235
    %v2253 = vadd.f32 %v2180, %v2215
    %v2254 = vadd.f32 %v2181, %v2218
    %v2255 = vadd.f32 %v2182, %v2214
    %v2256 = vadd.f32 %v2183, %v2217
    %v2257 = vadd.f32 %v2184, %v2221
    %v2258 = vadd.f32 %v2185, %v2224
    %v2259 = vadd.f32 %v2186, %v2220
    %v2260 = vadd.f32 %v2187, %v2223
    %v2261 = vadd.f32 %v2188, %v2227
    %v2262 = vadd.f32 %v2189, %v2230
    %v2263 = vadd.f32 %v2190, %v2226
    %v2264 = vadd.f32 %v2191, %v2229
    %v2265 = vadd.f32 %v2192, %v2233
    %v2266 = vadd.f32 %v2193, %v2236
    %v2267 = vadd.f32 %v2194, %v2232
    %v2268 = vadd.f32 %v2195, %v2235
    %v2269 = vsel %vm2212, %v2255, -inf
    %v2270 = vmax.f32 %v2253, %v2269
    %v2271 = vrot.slane %v2270, 4
    %v2272 = vmax.f32 %v2270, %v2271
    %v2273 = vrot.slane %v2272, 2
    %v2274 = vmax.f32 %v2272, %v2273
    %v2275 = vrot.slane %v2274, 1
    %v2276 = vmax.f32 %v2274, %v2275
    %v2277 = vsel %vm2212, %v2256, -inf
    %v2278 = vmax.f32 %v2254, %v2277
    %v2279 = vrot.slane %v2278, 4
    %v2280 = vmax.f32 %v2278, %v2279
    %v2281 = vrot.slane %v2280, 2
    %v2282 = vmax.f32 %v2280, %v2281
    %v2283 = vrot.slane %v2282, 1
    %v2284 = vmax.f32 %v2282, %v2283
    %v2285 = vsel %vm2212, %v2259, -inf
    %v2286 = vmax.f32 %v2257, %v2285
    %v2287 = vrot.slane %v2286, 4
    %v2288 = vmax.f32 %v2286, %v2287
    %v2289 = vrot.slane %v2288, 2
    %v2290 = vmax.f32 %v2288, %v2289
    %v2291 = vrot.slane %v2290, 1
    %v2292 = vmax.f32 %v2290, %v2291
    %v2293 = vsel %vm2212, %v2260, -inf
    %v2294 = vmax.f32 %v2258, %v2293
    %v2295 = vrot.slane %v2294, 4
    %v2296 = vmax.f32 %v2294, %v2295
    %v2297 = vrot.slane %v2296, 2
    %v2298 = vmax.f32 %v2296, %v2297
    %v2299 = vrot.slane %v2298, 1
    %v2300 = vmax.f32 %v2298, %v2299
    %v2301 = vsel %vm2212, %v2263, -inf
    %v2302 = vmax.f32 %v2261, %v2301
    %v2303 = vrot.slane %v2302, 4
    %v2304 = vmax.f32 %v2302, %v2303
    %v2305 = vrot.slane %v2304, 2
    %v2306 = vmax.f32 %v2304, %v2305
    %v2307 = vrot.slane %v2306, 1
    %v2308 = vmax.f32 %v2306, %v2307
    %v2309 = vsel %vm2212, %v2264, -inf
    %v2310 = vmax.f32 %v2262, %v2309
    %v2311 = vrot.slane %v2310, 4
    %v2312 = vmax.f32 %v2310, %v2311
    %v2313 = vrot.slane %v2312, 2
    %v2314 = vmax.f32 %v2312, %v2313
    %v2315 = vrot.slane %v2314, 1
    %v2316 = vmax.f32 %v2314, %v2315
    %v2317 = vsel %vm2212, %v2267, -inf
    %v2318 = vmax.f32 %v2265, %v2317
    %v2319 = vrot.slane %v2318, 4
    %v2320 = vmax.f32 %v2318, %v2319
    %v2321 = vrot.slane %v2320, 2
    %v2322 = vmax.f32 %v2320, %v2321
    %v2323 = vrot.slane %v2322, 1
    %v2324 = vmax.f32 %v2322, %v2323
    %v2325 = vsel %vm2212, %v2268, -inf
    %v2326 = vmax.f32 %v2266, %v2325
    %v2327 = vrot.slane %v2326, 4
    %v2328 = vmax.f32 %v2326, %v2327
    %v2329 = vrot.slane %v2328, 2
    %v2330 = vmax.f32 %v2328, %v2329
    %v2331 = vrot.slane %v2330, 1
    %v2332 = vmax.f32 %v2330, %v2331
    %v2333 = vld [vmem:[%s2] sm:$0x3]
    %v2335 = vlaneseq
    %v2336 = vshrl.u32 %v2335, 7
    %v2337 = vsub.s32 0, %v2336
    %v2338 = vrot.slane %v2333, %v2337
    %v2339 = vlaneseq
    %v2340 = vshrl.u32 %v2339, 7
    %v2341 = vsub.s32 1, %v2340
    %v2342 = vrot.slane %v2333, %v2341
    %v2345 = vadd.f32 %v2276, %v2338
    %v2346 = vadd.f32 %v2284, %v2342
    %v2347 = vadd.f32 %v2292, %v2338
    %v2348 = vadd.f32 %v2300, %v2342
    %v2349 = vadd.f32 %v2308, %v2338
    %v2350 = vadd.f32 %v2316, %v2342
    %v2351 = vadd.f32 %v2324, %v2338
    %v2352 = vadd.f32 %v2332, %v2342
    %v2353 = vmax.f32 %v2345, 0.0
    %v2354 = vmax.f32 %v2346, 0.0
    %v2355 = vmax.f32 %v2347, 0.0
    %v2356 = vmax.f32 %v2348, 0.0
    %v2357 = vmax.f32 %v2349, 0.0
    %v2358 = vmax.f32 %v2350, 0.0
    %v2359 = vmax.f32 %v2351, 0.0
    %v2360 = vmax.f32 %v2352, 0.0
    %v2377 = vrot.slane %v1574, 1
    %v2378 = vrot.slane %v1578, 1
    %v2379 = vsel %vm2139, %v2377, %v2378
    %v2380 = vrot.slane %v1576, 1
    %v2381 = vrot.slane %v1580, 1
    %v2382 = vsel %vm2139, %v2380, %v2381
    %v2383 = vrot.slane %v1584, 1
    %v2384 = vrot.slane %v1588, 1
    %v2385 = vsel %vm2139, %v2383, %v2384
    %v2386 = vrot.slane %v1586, 1
    %v2387 = vrot.slane %v1590, 1
    %v2388 = vsel %vm2139, %v2386, %v2387
    %v2389 = vrot.slane %v1594, 1
    %v2390 = vrot.slane %v1598, 1
    %v2391 = vsel %vm2139, %v2389, %v2390
    %v2392 = vrot.slane %v1596, 1
    %v2393 = vrot.slane %v1600, 1
    %v2394 = vsel %vm2139, %v2392, %v2393
    %v2395 = vrot.slane %v1604, 1
    %v2396 = vrot.slane %v1608, 1
    %v2397 = vsel %vm2139, %v2395, %v2396
    %v2398 = vrot.slane %v1606, 1
    %v2399 = vrot.slane %v1610, 1
    %v2400 = vsel %vm2139, %v2398, %v2399
    %v2417 = vadd.f32 %v1501, %v2379
    %v2418 = vadd.f32 %v1503, %v2382
    %v2419 = vadd.f32 %v1505, %v2378
    %v2420 = vadd.f32 %v1507, %v2381
    %v2421 = vadd.f32 %v1511, %v2385
    %v2422 = vadd.f32 %v1513, %v2388
    %v2423 = vadd.f32 %v1515, %v2384
    %v2424 = vadd.f32 %v1517, %v2387
    %v2425 = vadd.f32 %v1521, %v2391
    %v2426 = vadd.f32 %v1523, %v2394
    %v2427 = vadd.f32 %v1525, %v2390
    %v2428 = vadd.f32 %v1527, %v2393
    %v2429 = vadd.f32 %v1531, %v2397
    %v2430 = vadd.f32 %v1533, %v2400
    %v2431 = vadd.f32 %v1535, %v2396
    %v2432 = vadd.f32 %v1537, %v2399
    %v2449 = vrot.slane %v1647, 2
    %v2450 = vrot.slane %v1651, 2
    %v2451 = vsel %vm2212, %v2449, %v2450
    %v2452 = vrot.slane %v1649, 2
    %v2453 = vrot.slane %v1653, 2
    %v2454 = vsel %vm2212, %v2452, %v2453
    %v2455 = vrot.slane %v1657, 2
    %v2456 = vrot.slane %v1661, 2
    %v2457 = vsel %vm2212, %v2455, %v2456
    %v2458 = vrot.slane %v1659, 2
    %v2459 = vrot.slane %v1663, 2
    %v2460 = vsel %vm2212, %v2458, %v2459
    %v2461 = vrot.slane %v1667, 2
    %v2462 = vrot.slane %v1671, 2
    %v2463 = vsel %vm2212, %v2461, %v2462
    %v2464 = vrot.slane %v1669, 2
    %v2465 = vrot.slane %v1673, 2
    %v2466 = vsel %vm2212, %v2464, %v2465
    %v2467 = vrot.slane %v1677, 2
    %v2468 = vrot.slane %v1681, 2
    %v2469 = vsel %vm2212, %v2467, %v2468
    %v2470 = vrot.slane %v1679, 2
    %v2471 = vrot.slane %v1683, 2
    %v2472 = vsel %vm2212, %v2470, %v2471
    %v2489 = vadd.f32 %v2417, %v2451
    %v2490 = vadd.f32 %v2418, %v2454
    %v2491 = vadd.f32 %v2419, %v2450
    %v2492 = vadd.f32 %v2420, %v2453
    %v2493 = vadd.f32 %v2421, %v2457
    %v2494 = vadd.f32 %v2422, %v2460
    %v2495 = vadd.f32 %v2423, %v2456
    %v2496 = vadd.f32 %v2424, %v2459
    %v2497 = vadd.f32 %v2425, %v2463
    %v2498 = vadd.f32 %v2426, %v2466
    %v2499 = vadd.f32 %v2427, %v2462
    %v2500 = vadd.f32 %v2428, %v2465
    %v2501 = vadd.f32 %v2429, %v2469
    %v2502 = vadd.f32 %v2430, %v2472
    %v2503 = vadd.f32 %v2431, %v2468
    %v2504 = vadd.f32 %v2432, %v2471
    %vm2521 = vcmask 1044480
    %v2522 = vrot.slane %v1720, 3
    %v2523 = vrot.slane %v1724, 3
    %v2524 = vsel %vm2521, %v2522, %v2523
    %v2525 = vrot.slane %v1722, 3
    %v2526 = vrot.slane %v1726, 3
    %v2527 = vsel %vm2521, %v2525, %v2526
    %v2528 = vrot.slane %v1730, 3
    %v2529 = vrot.slane %v1734, 3
    %v2530 = vsel %vm2521, %v2528, %v2529
    %v2531 = vrot.slane %v1732, 3
    %v2532 = vrot.slane %v1736, 3
    %v2533 = vsel %vm2521, %v2531, %v2532
    %v2534 = vrot.slane %v1740, 3
    %v2535 = vrot.slane %v1744, 3
    %v2536 = vsel %vm2521, %v2534, %v2535
    %v2537 = vrot.slane %v1742, 3
    %v2538 = vrot.slane %v1746, 3
    %v2539 = vsel %vm2521, %v2537, %v2538
    %v2540 = vrot.slane %v1750, 3
    %v2541 = vrot.slane %v1754, 3
    %v2542 = vsel %vm2521, %v2540, %v2541
    %v2543 = vrot.slane %v1752, 3
    %v2544 = vrot.slane %v1756, 3
    %v2545 = vsel %vm2521, %v2543, %v2544
    %v2562 = vadd.f32 %v2489, %v2524
    %v2563 = vadd.f32 %v2490, %v2527
    %v2564 = vadd.f32 %v2491, %v2523
    %v2565 = vadd.f32 %v2492, %v2526
    %v2566 = vadd.f32 %v2493, %v2530
    %v2567 = vadd.f32 %v2494, %v2533
    %v2568 = vadd.f32 %v2495, %v2529
    %v2569 = vadd.f32 %v2496, %v2532
    %v2570 = vadd.f32 %v2497, %v2536
    %v2571 = vadd.f32 %v2498, %v2539
    %v2572 = vadd.f32 %v2499, %v2535
    %v2573 = vadd.f32 %v2500, %v2538
    %v2574 = vadd.f32 %v2501, %v2542
    %v2575 = vadd.f32 %v2502, %v2545
    %v2576 = vadd.f32 %v2503, %v2541
    %v2577 = vadd.f32 %v2504, %v2544
    %v2578 = vsel %vm2521, %v2564, -inf
    %v2579 = vmax.f32 %v2562, %v2578
    %v2580 = vrot.slane %v2579, 4
    %v2581 = vmax.f32 %v2579, %v2580
    %v2582 = vrot.slane %v2581, 2
    %v2583 = vmax.f32 %v2581, %v2582
    %v2584 = vrot.slane %v2583, 1
    %v2585 = vmax.f32 %v2583, %v2584
    %v2586 = vsel %vm2521, %v2565, -inf
    %v2587 = vmax.f32 %v2563, %v2586
    %v2588 = vrot.slane %v2587, 4
    %v2589 = vmax.f32 %v2587, %v2588
    %v2590 = vrot.slane %v2589, 2
    %v2591 = vmax.f32 %v2589, %v2590
    %v2592 = vrot.slane %v2591, 1
    %v2593 = vmax.f32 %v2591, %v2592
    %v2594 = vsel %vm2521, %v2568, -inf
    %v2595 = vmax.f32 %v2566, %v2594
    %v2596 = vrot.slane %v2595, 4
    %v2597 = vmax.f32 %v2595, %v2596
    %v2598 = vrot.slane %v2597, 2
    %v2599 = vmax.f32 %v2597, %v2598
    %v2600 = vrot.slane %v2599, 1
    %v2601 = vmax.f32 %v2599, %v2600
    %v2602 = vsel %vm2521, %v2569, -inf
    %v2603 = vmax.f32 %v2567, %v2602
    %v2604 = vrot.slane %v2603, 4
    %v2605 = vmax.f32 %v2603, %v2604
    %v2606 = vrot.slane %v2605, 2
    %v2607 = vmax.f32 %v2605, %v2606
    %v2608 = vrot.slane %v2607, 1
    %v2609 = vmax.f32 %v2607, %v2608
    %v2610 = vsel %vm2521, %v2572, -inf
    %v2611 = vmax.f32 %v2570, %v2610
    %v2612 = vrot.slane %v2611, 4
    %v2613 = vmax.f32 %v2611, %v2612
    %v2614 = vrot.slane %v2613, 2
    %v2615 = vmax.f32 %v2613, %v2614
    %v2616 = vrot.slane %v2615, 1
    %v2617 = vmax.f32 %v2615, %v2616
    %v2618 = vsel %vm2521, %v2573, -inf
    %v2619 = vmax.f32 %v2571, %v2618
    %v2620 = vrot.slane %v2619, 4
    %v2621 = vmax.f32 %v2619, %v2620
    %v2622 = vrot.slane %v2621, 2
    %v2623 = vmax.f32 %v2621, %v2622
    %v2624 = vrot.slane %v2623, 1
    %v2625 = vmax.f32 %v2623, %v2624
    %v2626 = vsel %vm2521, %v2576, -inf
    %v2627 = vmax.f32 %v2574, %v2626
    %v2628 = vrot.slane %v2627, 4
    %v2629 = vmax.f32 %v2627, %v2628
    %v2630 = vrot.slane %v2629, 2
    %v2631 = vmax.f32 %v2629, %v2630
    %v2632 = vrot.slane %v2631, 1
    %v2633 = vmax.f32 %v2631, %v2632
    %v2634 = vsel %vm2521, %v2577, -inf
    %v2635 = vmax.f32 %v2575, %v2634
    %v2636 = vrot.slane %v2635, 4
    %v2637 = vmax.f32 %v2635, %v2636
    %v2638 = vrot.slane %v2637, 2
    %v2639 = vmax.f32 %v2637, %v2638
    %v2640 = vrot.slane %v2639, 1
    %v2641 = vmax.f32 %v2639, %v2640
    %v2642 = vld [vmem:[%s2 + $0x2] sm:$0x3]
    %v2644 = vlaneseq
    %v2645 = vshrl.u32 %v2644, 7
    %v2646 = vsub.s32 0, %v2645
    %v2647 = vrot.slane %v2642, %v2646
    %v2648 = vlaneseq
    %v2649 = vshrl.u32 %v2648, 7
    %v2650 = vsub.s32 1, %v2649
    %v2651 = vrot.slane %v2642, %v2650
    %v2654 = vadd.f32 %v2585, %v2647
    %v2655 = vadd.f32 %v2593, %v2651
    %v2656 = vadd.f32 %v2601, %v2647
    %v2657 = vadd.f32 %v2609, %v2651
    %v2658 = vadd.f32 %v2617, %v2647
    %v2659 = vadd.f32 %v2625, %v2651
    %v2660 = vadd.f32 %v2633, %v2647
    %v2661 = vadd.f32 %v2641, %v2651
    %v2662 = vmax.f32 %v2654, 0.0
    %v2663 = vmax.f32 %v2655, 0.0
    %v2664 = vmax.f32 %v2656, 0.0
    %v2665 = vmax.f32 %v2657, 0.0
    %v2666 = vmax.f32 %v2658, 0.0
    %v2667 = vmax.f32 %v2659, 0.0
    %v2668 = vmax.f32 %v2660, 0.0
    %v2669 = vmax.f32 %v2661, 0.0
    %v2686 = vrot.slane %v1866, 1
    %v2687 = vrot.slane %v1870, 1
    %v2688 = vsel %vm2139, %v2686, %v2687
    %v2689 = vrot.slane %v1868, 1
    %v2690 = vrot.slane %v1872, 1
    %v2691 = vsel %vm2139, %v2689, %v2690
    %v2692 = vrot.slane %v1876, 1
    %v2693 = vrot.slane %v1880, 1
    %v2694 = vsel %vm2139, %v2692, %v2693
    %v2695 = vrot.slane %v1878, 1
    %v2696 = vrot.slane %v1882, 1
    %v2697 = vsel %vm2139, %v2695, %v2696
    %v2698 = vrot.slane %v1886, 1
    %v2699 = vrot.slane %v1890, 1
    %v2700 = vsel %vm2139, %v2698, %v2699
    %v2701 = vrot.slane %v1888, 1
    %v2702 = vrot.slane %v1892, 1
    %v2703 = vsel %vm2139, %v2701, %v2702
    %v2704 = vrot.slane %v1896, 1
    %v2705 = vrot.slane %v1900, 1
    %v2706 = vsel %vm2139, %v2704, %v2705
    %v2707 = vrot.slane %v1898, 1
    %v2708 = vrot.slane %v1902, 1
    %v2709 = vsel %vm2139, %v2707, %v2708
    %v2726 = vadd.f32 %v1793, %v2688
    %v2727 = vadd.f32 %v1795, %v2691
    %v2728 = vadd.f32 %v1797, %v2687
    %v2729 = vadd.f32 %v1799, %v2690
    %v2730 = vadd.f32 %v1803, %v2694
    %v2731 = vadd.f32 %v1805, %v2697
    %v2732 = vadd.f32 %v1807, %v2693
    %v2733 = vadd.f32 %v1809, %v2696
    %v2734 = vadd.f32 %v1813, %v2700
    %v2735 = vadd.f32 %v1815, %v2703
    %v2736 = vadd.f32 %v1817, %v2699
    %v2737 = vadd.f32 %v1819, %v2702
    %v2738 = vadd.f32 %v1823, %v2706
    %v2739 = vadd.f32 %v1825, %v2709
    %v2740 = vadd.f32 %v1827, %v2705
    %v2741 = vadd.f32 %v1829, %v2708
    %v2758 = vrot.slane %v1939, 2
    %v2759 = vrot.slane %v1943, 2
    %v2760 = vsel %vm2212, %v2758, %v2759
    %v2761 = vrot.slane %v1941, 2
    %v2762 = vrot.slane %v1945, 2
    %v2763 = vsel %vm2212, %v2761, %v2762
    %v2764 = vrot.slane %v1949, 2
    %v2765 = vrot.slane %v1953, 2
    %v2766 = vsel %vm2212, %v2764, %v2765
    %v2767 = vrot.slane %v1951, 2
    %v2768 = vrot.slane %v1955, 2
    %v2769 = vsel %vm2212, %v2767, %v2768
    %v2770 = vrot.slane %v1959, 2
    %v2771 = vrot.slane %v1963, 2
    %v2772 = vsel %vm2212, %v2770, %v2771
    %v2773 = vrot.slane %v1961, 2
    %v2774 = vrot.slane %v1965, 2
    %v2775 = vsel %vm2212, %v2773, %v2774
    %v2776 = vrot.slane %v1969, 2
    %v2777 = vrot.slane %v1973, 2
    %v2778 = vsel %vm2212, %v2776, %v2777
    %v2779 = vrot.slane %v1971, 2
    %v2780 = vrot.slane %v1975, 2
    %v2781 = vsel %vm2212, %v2779, %v2780
    %v2798 = vadd.f32 %v2726, %v2760
    %v2799 = vadd.f32 %v2727, %v2763
    %v2800 = vadd.f32 %v2728, %v2759
    %v2801 = vadd.f32 %v2729, %v2762
    %v2802 = vadd.f32 %v2730, %v2766
    %v2803 = vadd.f32 %v2731, %v2769
    %v2804 = vadd.f32 %v2732, %v2765
    %v2805 = vadd.f32 %v2733, %v2768
    %v2806 = vadd.f32 %v2734, %v2772
    %v2807 = vadd.f32 %v2735, %v2775
    %v2808 = vadd.f32 %v2736, %v2771
    %v2809 = vadd.f32 %v2737, %v2774
    %v2810 = vadd.f32 %v2738, %v2778
    %v2811 = vadd.f32 %v2739, %v2781
    %v2812 = vadd.f32 %v2740, %v2777
    %v2813 = vadd.f32 %v2741, %v2780
    %v2830 = vrot.slane %v2012, 3
    %v2831 = vrot.slane %v2016, 3
    %v2832 = vsel %vm2521, %v2830, %v2831
    %v2833 = vrot.slane %v2014, 3
    %v2834 = vrot.slane %v2018, 3
    %v2835 = vsel %vm2521, %v2833, %v2834
    %v2836 = vrot.slane %v2022, 3
    %v2837 = vrot.slane %v2026, 3
    %v2838 = vsel %vm2521, %v2836, %v2837
    %v2839 = vrot.slane %v2024, 3
    %v2840 = vrot.slane %v2028, 3
    %v2841 = vsel %vm2521, %v2839, %v2840
    %v2842 = vrot.slane %v2032, 3
    %v2843 = vrot.slane %v2036, 3
    %v2844 = vsel %vm2521, %v2842, %v2843
    %v2845 = vrot.slane %v2034, 3
    %v2846 = vrot.slane %v2038, 3
    %v2847 = vsel %vm2521, %v2845, %v2846
    %v2848 = vrot.slane %v2042, 3
    %v2849 = vrot.slane %v2046, 3
    %v2850 = vsel %vm2521, %v2848, %v2849
    %v2851 = vrot.slane %v2044, 3
    %v2852 = vrot.slane %v2048, 3
    %v2853 = vsel %vm2521, %v2851, %v2852
    %v2870 = vadd.f32 %v2798, %v2832
    %v2871 = vadd.f32 %v2799, %v2835
    %v2872 = vadd.f32 %v2800, %v2831
    %v2873 = vadd.f32 %v2801, %v2834
    %v2874 = vadd.f32 %v2802, %v2838
    %v2875 = vadd.f32 %v2803, %v2841
    %v2876 = vadd.f32 %v2804, %v2837
    %v2877 = vadd.f32 %v2805, %v2840
    %v2878 = vadd.f32 %v2806, %v2844
    %v2879 = vadd.f32 %v2807, %v2847
    %v2880 = vadd.f32 %v2808, %v2843
    %v2881 = vadd.f32 %v2809, %v2846
    %v2882 = vadd.f32 %v2810, %v2850
    %v2883 = vadd.f32 %v2811, %v2853
    %v2884 = vadd.f32 %v2812, %v2849
    %v2885 = vadd.f32 %v2813, %v2852
    %vm2902 = vcmask 1043456
    %v2903 = vrot.slane %v2085, 4
    %v2904 = vrot.slane %v2089, 4
    %v2905 = vsel %vm2902, %v2903, %v2904
    %v2906 = vrot.slane %v2087, 4
    %v2907 = vrot.slane %v2091, 4
    %v2908 = vsel %vm2902, %v2906, %v2907
    %v2909 = vrot.slane %v2095, 4
    %v2910 = vrot.slane %v2099, 4
    %v2911 = vsel %vm2902, %v2909, %v2910
    %v2912 = vrot.slane %v2097, 4
    %v2913 = vrot.slane %v2101, 4
    %v2914 = vsel %vm2902, %v2912, %v2913
    %v2915 = vrot.slane %v2105, 4
    %v2916 = vrot.slane %v2109, 4
    %v2917 = vsel %vm2902, %v2915, %v2916
    %v2918 = vrot.slane %v2107, 4
    %v2919 = vrot.slane %v2111, 4
    %v2920 = vsel %vm2902, %v2918, %v2919
    %v2921 = vrot.slane %v2115, 4
    %v2922 = vrot.slane %v2119, 4
    %v2923 = vsel %vm2902, %v2921, %v2922
    %v2924 = vrot.slane %v2117, 4
    %v2925 = vrot.slane %v2121, 4
    %v2926 = vsel %vm2902, %v2924, %v2925
    %v2943 = vadd.f32 %v2870, %v2905
    %v2944 = vadd.f32 %v2871, %v2908
    %v2945 = vadd.f32 %v2872, %v2904
    %v2946 = vadd.f32 %v2873, %v2907
    %v2947 = vadd.f32 %v2874, %v2911
    %v2948 = vadd.f32 %v2875, %v2914
    %v2949 = vadd.f32 %v2876, %v2910
    %v2950 = vadd.f32 %v2877, %v2913
    %v2951 = vadd.f32 %v2878, %v2917
    %v2952 = vadd.f32 %v2879, %v2920
    %v2953 = vadd.f32 %v2880, %v2916
    %v2954 = vadd.f32 %v2881, %v2919
    %v2955 = vadd.f32 %v2882, %v2923
    %v2956 = vadd.f32 %v2883, %v2926
    %v2957 = vadd.f32 %v2884, %v2922
    %v2958 = vadd.f32 %v2885, %v2925
    %v2959 = vsel %vm2902, %v2945, -inf
    %v2960 = vmax.f32 %v2943, %v2959
    %v2961 = vrot.slane %v2960, 4
    %v2962 = vmax.f32 %v2960, %v2961
    %v2963 = vrot.slane %v2962, 2
    %v2964 = vmax.f32 %v2962, %v2963
    %v2965 = vrot.slane %v2964, 1
    %v2966 = vmax.f32 %v2964, %v2965
    %v2967 = vsel %vm2902, %v2946, -inf
    %v2968 = vmax.f32 %v2944, %v2967
    %v2969 = vrot.slane %v2968, 4
    %v2970 = vmax.f32 %v2968, %v2969
    %v2971 = vrot.slane %v2970, 2
    %v2972 = vmax.f32 %v2970, %v2971
    %v2973 = vrot.slane %v2972, 1
    %v2974 = vmax.f32 %v2972, %v2973
    %v2975 = vsel %vm2902, %v2949, -inf
    %v2976 = vmax.f32 %v2947, %v2975
    %v2977 = vrot.slane %v2976, 4
    %v2978 = vmax.f32 %v2976, %v2977
    %v2979 = vrot.slane %v2978, 2
    %v2980 = vmax.f32 %v2978, %v2979
    %v2981 = vrot.slane %v2980, 1
    %v2982 = vmax.f32 %v2980, %v2981
    %v2983 = vsel %vm2902, %v2950, -inf
    %v2984 = vmax.f32 %v2948, %v2983
    %v2985 = vrot.slane %v2984, 4
    %v2986 = vmax.f32 %v2984, %v2985
    %v2987 = vrot.slane %v2986, 2
    %v2988 = vmax.f32 %v2986, %v2987
    %v2989 = vrot.slane %v2988, 1
    %v2990 = vmax.f32 %v2988, %v2989
    %v2991 = vsel %vm2902, %v2953, -inf
    %v2992 = vmax.f32 %v2951, %v2991
    %v2993 = vrot.slane %v2992, 4
    %v2994 = vmax.f32 %v2992, %v2993
    %v2995 = vrot.slane %v2994, 2
    %v2996 = vmax.f32 %v2994, %v2995
    %v2997 = vrot.slane %v2996, 1
    %v2998 = vmax.f32 %v2996, %v2997
    %v2999 = vsel %vm2902, %v2954, -inf
    %v3000 = vmax.f32 %v2952, %v2999
    %v3001 = vrot.slane %v3000, 4
    %v3002 = vmax.f32 %v3000, %v3001
    %v3003 = vrot.slane %v3002, 2
    %v3004 = vmax.f32 %v3002, %v3003
    %v3005 = vrot.slane %v3004, 1
    %v3006 = vmax.f32 %v3004, %v3005
    %v3007 = vsel %vm2902, %v2957, -inf
    %v3008 = vmax.f32 %v2955, %v3007
    %v3009 = vrot.slane %v3008, 4
    %v3010 = vmax.f32 %v3008, %v3009
    %v3011 = vrot.slane %v3010, 2
    %v3012 = vmax.f32 %v3010, %v3011
    %v3013 = vrot.slane %v3012, 1
    %v3014 = vmax.f32 %v3012, %v3013
    %v3015 = vsel %vm2902, %v2958, -inf
    %v3016 = vmax.f32 %v2956, %v3015
    %v3017 = vrot.slane %v3016, 4
    %v3018 = vmax.f32 %v3016, %v3017
    %v3019 = vrot.slane %v3018, 2
    %v3020 = vmax.f32 %v3018, %v3019
    %v3021 = vrot.slane %v3020, 1
    %v3022 = vmax.f32 %v3020, %v3021
    %v3023 = vld [vmem:[%s2 + $0x4] sm:$0x3]
    %v3025 = vlaneseq
    %v3026 = vshrl.u32 %v3025, 7
    %v3027 = vsub.s32 0, %v3026
    %v3028 = vrot.slane %v3023, %v3027
    %v3029 = vlaneseq
    %v3030 = vshrl.u32 %v3029, 7
    %v3031 = vsub.s32 1, %v3030
    %v3032 = vrot.slane %v3023, %v3031
    %v3035 = vadd.f32 %v2966, %v3028
    %v3036 = vadd.f32 %v2974, %v3032
    %v3037 = vadd.f32 %v2982, %v3028
    %v3038 = vadd.f32 %v2990, %v3032
    %v3039 = vadd.f32 %v2998, %v3028
    %v3040 = vadd.f32 %v3006, %v3032
    %v3041 = vadd.f32 %v3014, %v3028
    %v3042 = vadd.f32 %v3022, %v3032
    %v3043 = vmax.f32 %v3035, 0.0
    %v3044 = vmax.f32 %v3036, 0.0
    %v3045 = vmax.f32 %v3037, 0.0
    %v3046 = vmax.f32 %v3038, 0.0
    %v3047 = vmax.f32 %v3039, 0.0
    %v3048 = vmax.f32 %v3040, 0.0
    %v3049 = vmax.f32 %v3041, 0.0
    %v3050 = vmax.f32 %v3042, 0.0
    %v3059 = vrot.slane %v2355, 7
    %vm3060 = vcmask 1041409
    %v3061 = vsel %vm3060, %v3059, %v2353
    %v3062 = vrot.slane %v2357, 6
    %vm3063 = vcmask 1042434
    %v3064 = vsel %vm3063, %v3062, %v3061
    %v3065 = vrot.slane %v2359, 5
    %vm3066 = vcmask 1043459
    %v3067 = vsel %vm3066, %v3065, %v3064
    %v3068 = vrot.slane %v2356, 7
    %v3069 = vsel %vm3060, %v3068, %v2354
    %v3070 = vrot.slane %v2358, 6
    %v3071 = vsel %vm3063, %v3070, %v3069
    %v3072 = vrot.slane %v2360, 5
    %v3073 = vsel %vm3066, %v3072, %v3071
    %v3084 = vrot.slane %v2664, 7
    %v3085 = vsel %vm3060, %v3084, %v2662
    %v3086 = vrot.slane %v2666, 6
    %v3087 = vsel %vm3063, %v3086, %v3085
    %v3088 = vrot.slane %v2668, 5
    %v3089 = vsel %vm3066, %v3088, %v3087
    %v3090 = vrot.slane %v2665, 7
    %v3091 = vsel %vm3060, %v3090, %v2663
    %v3092 = vrot.slane %v2667, 6
    %v3093 = vsel %vm3063, %v3092, %v3091
    %v3094 = vrot.slane %v2669, 5
    %v3095 = vsel %vm3066, %v3094, %v3093
    %v3106 = vrot.slane %v3045, 7
    %v3107 = vsel %vm3060, %v3106, %v3043
    %v3108 = vrot.slane %v3047, 6
    %v3109 = vsel %vm3063, %v3108, %v3107
    %v3110 = vrot.slane %v3049, 5
    %v3111 = vsel %vm3066, %v3110, %v3109
    %v3112 = vrot.slane %v3046, 7
    %v3113 = vsel %vm3060, %v3112, %v3044
    %v3114 = vrot.slane %v3048, 6
    %v3115 = vsel %vm3063, %v3114, %v3113
    %v3116 = vrot.slane %v3050, 5
    %v3117 = vsel %vm3066, %v3116, %v3115
    %v3120 = vld [vmem:[#allocation7] sm:$0xff]
    %v3121 = vld [vmem:[#allocation7 + $0x8] sm:$0xff]
    %v3122 = vld [vmem:[#allocation7 + $0x10] sm:$0xff]
    %v3123 = vld [vmem:[#allocation7 + $0x18] sm:$0xff]
    %v3124 = vld [vmem:[#allocation7 + $0x20] sm:$0xff]
    %v3125 = vld [vmem:[#allocation7 + $0x28] sm:$0xff]
    %v3126 = vld [vmem:[#allocation7 + $0x30] sm:$0xff]
    %v3127 = vld [vmem:[#allocation7 + $0x38] sm:$0xff]
    %v3128 = vld [vmem:[#allocation7 + $0x40] sm:$0xff]
    %v3129 = vld [vmem:[#allocation7 + $0x48] sm:$0xff]
    %v3130 = vld [vmem:[#allocation7 + $0x50] sm:$0xff]
    %v3131 = vld [vmem:[#allocation7 + $0x58] sm:$0xff]
    %v3132 = vld [vmem:[#allocation7 + $0x60] sm:$0xff]
    %v3133 = vld [vmem:[#allocation7 + $0x68] sm:$0xff]
    %v3134 = vld [vmem:[#allocation7 + $0x70] sm:$0xff]
    %v3135 = vld [vmem:[#allocation7 + $0x78] sm:$0xff]
    %v3136 = vld [vmem:[#allocation7 + $0x80] sm:$0xff]
    %v3137 = vld [vmem:[#allocation7 + $0x88] sm:$0xff]
    %v3138 = vld [vmem:[#allocation7 + $0x90] sm:$0xff]
    %v3139 = vld [vmem:[#allocation7 + $0x98] sm:$0xff]
    %v3140 = vld [vmem:[#allocation7 + $0xa0] sm:$0xff]
    %v3141 = vld [vmem:[#allocation7 + $0xa8] sm:$0xff]
    %v3142 = vld [vmem:[#allocation7 + $0xb0] sm:$0xff]
    %v3143 = vld [vmem:[#allocation7 + $0xb8] sm:$0xff]
    %v3144 = vld [vmem:[#allocation7 + $0xc0] sm:$0xff]
    %v3145 = vld [vmem:[#allocation7 + $0xc8] sm:$0xff]
    %v3146 = vld [vmem:[#allocation7 + $0xd0] sm:$0xff]
    %v3147 = vld [vmem:[#allocation7 + $0xd8] sm:$0xff]
    %v3148 = vld [vmem:[#allocation7 + $0xe0] sm:$0xff]
    %v3149 = vld [vmem:[#allocation7 + $0xe8] sm:$0xff]
    %v3150 = vld [vmem:[#allocation7 + $0xf0] sm:$0xff]
    %v3151 = vld [vmem:[#allocation7 + $0xf8] sm:$0xff]
    %v3152 = vld [vmem:[#allocation7 + $0x100] sm:$0xff]
    %v3153 = vld [vmem:[#allocation7 + $0x108] sm:$0xff]
    %v3154 = vld [vmem:[#allocation7 + $0x110] sm:$0xff]
    %v3155 = vld [vmem:[#allocation7 + $0x118] sm:$0xff]
    %v3156 = vld [vmem:[#allocation7 + $0x120] sm:$0xff]
    %v3157 = vld [vmem:[#allocation7 + $0x128] sm:$0xff]
    %v3158 = vld [vmem:[#allocation7 + $0x130] sm:$0xff]
    %v3159 = vld [vmem:[#allocation7 + $0x138] sm:$0xff]
    %v3160 = vld [vmem:[#allocation7 + $0x140] sm:$0xff]
    %v3161 = vld [vmem:[#allocation7 + $0x148] sm:$0xff]
    %v3162 = vld [vmem:[#allocation7 + $0x150] sm:$0xff]
    %v3163 = vld [vmem:[#allocation7 + $0x158] sm:$0xff]
    %v3164 = vld [vmem:[#allocation7 + $0x160] sm:$0xff]
    %v3165 = vld [vmem:[#allocation7 + $0x168] sm:$0xff]
    %v3166 = vld [vmem:[#allocation7 + $0x170] sm:$0xff]
    %v3167 = vld [vmem:[#allocation7 + $0x178] sm:$0xff]
    %v3168 = vld [vmem:[#allocation7 + $0x180] sm:$0xff]
    %v3169 = vld [vmem:[#allocation7 + $0x188] sm:$0xff]
    %v3170 = vld [vmem:[#allocation7 + $0x190] sm:$0xff]
    %v3171 = vld [vmem:[#allocation7 + $0x198] sm:$0xff]
    %v3172 = vld [vmem:[#allocation7 + $0x1a0] sm:$0xff]
    %v3173 = vld [vmem:[#allocation7 + $0x1a8] sm:$0xff]
    %v3174 = vld [vmem:[#allocation7 + $0x1b0] sm:$0xff]
    %v3175 = vld [vmem:[#allocation7 + $0x1b8] sm:$0xff]
    %v3176 = vld [vmem:[#allocation7 + $0x1c0] sm:$0xff]
    %v3177 = vld [vmem:[#allocation7 + $0x1c8] sm:$0xff]
    %v3178 = vld [vmem:[#allocation7 + $0x1d0] sm:$0xff]
    %v3179 = vld [vmem:[#allocation7 + $0x1d8] sm:$0xff]
    %v3180 = vld [vmem:[#allocation7 + $0x1e0] sm:$0xff]
    %v3181 = vld [vmem:[#allocation7 + $0x1e8] sm:$0xff]
    %v3182 = vld [vmem:[#allocation7 + $0x1f0] sm:$0xff]
    %v3183 = vld [vmem:[#allocation7 + $0x1f8] sm:$0xff]
    %v3184 = vld [vmem:[#allocation7 + $0x200] sm:$0xff]
    %v3185 = vld [vmem:[#allocation7 + $0x208] sm:$0xff]
    %v3186 = vld [vmem:[#allocation7 + $0x210] sm:$0xff]
    %v3187 = vld [vmem:[#allocation7 + $0x218] sm:$0xff]
    %v3188 = vld [vmem:[#allocation7 + $0x220] sm:$0xff]
    %v3189 = vld [vmem:[#allocation7 + $0x228] sm:$0xff]
    %v3190 = vld [vmem:[#allocation7 + $0x230] sm:$0xff]
    %v3191 = vld [vmem:[#allocation7 + $0x238] sm:$0xff]
    %v3192 = vld [vmem:[#allocation7 + $0x240] sm:$0xff]
    %v3193 = vld [vmem:[#allocation7 + $0x248] sm:$0xff]
    %v3194 = vld [vmem:[#allocation7 + $0x250] sm:$0xff]
    %v3195 = vld [vmem:[#allocation7 + $0x258] sm:$0xff]
    %v3196 = vld [vmem:[#allocation7 + $0x260] sm:$0xff]
    %v3197 = vld [vmem:[#allocation7 + $0x268] sm:$0xff]
    %v3198 = vld [vmem:[#allocation7 + $0x270] sm:$0xff]
    %v3199 = vld [vmem:[#allocation7 + $0x278] sm:$0xff]
    %v3200 = vld [vmem:[#allocation7 + $0x280] sm:$0xff]
    %v3201 = vld [vmem:[#allocation7 + $0x288] sm:$0xff]
    %v3202 = vld [vmem:[#allocation7 + $0x290] sm:$0xff]
    %v3203 = vld [vmem:[#allocation7 + $0x298] sm:$0xff]
    %v3204 = vld [vmem:[#allocation7 + $0x2a0] sm:$0xff]
    %v3205 = vld [vmem:[#allocation7 + $0x2a8] sm:$0xff]
    %v3206 = vld [vmem:[#allocation7 + $0x2b0] sm:$0xff]
    %v3207 = vld [vmem:[#allocation7 + $0x2b8] sm:$0xff]
    %v3208 = vld [vmem:[#allocation7 + $0x2c0] sm:$0xff]
    %v3209 = vld [vmem:[#allocation7 + $0x2c8] sm:$0xff]
    %v3210 = vld [vmem:[#allocation7 + $0x2d0] sm:$0xff]
    %v3211 = vld [vmem:[#allocation7 + $0x2d8] sm:$0xff]
    %v3212 = vld [vmem:[#allocation7 + $0x2e0] sm:$0xff]
    %v3213 = vld [vmem:[#allocation7 + $0x2e8] sm:$0xff]
    %v3214 = vld [vmem:[#allocation7 + $0x2f0] sm:$0xff]
    %v3215 = vld [vmem:[#allocation7 + $0x2f8] sm:$0xff]
    %v3216 = vld [vmem:[%s4] sm:$0x1]
    %v3218 = vlaneseq
    %v3219 = vshrl.u32 %v3218, 7
    %v3220 = vsub.s32 0, %v3219
    %v3221 = vrot.slane %v3216, %v3220
    %3223 = vmatprep.subr.mxu0 0.0
    %3224 = vmatpush1.msra.mxu0 %v3120
    %3225 = vmatprep.subr.mxu0 0.0
    %3226 = vmatpush1.msra.mxu0 %v3121
    %3227 = vmatprep.subr.mxu0 0.0
    %3228 = vmatpush1.msra.mxu0 %v3122
    %3229 = vmatprep.subr.mxu0 0.0
    %3230 = vmatpush1.msra.mxu0 %v3123
    %3231 = vmatprep.subr.mxu0 0.0
    %3232 = vmatpush1.msra.mxu0 %v3124
    %3233 = vmatprep.subr.mxu0 0.0
    %3234 = vmatpush1.msra.mxu0 %v3125
    %3235 = vmatprep.subr.mxu0 0.0
    %3236 = vmatpush1.msra.mxu0 %v3126
    %3237 = vmatprep.subr.mxu0 0.0
    %3238 = vmatpush1.msra.mxu0 %v3127
    %3239 = vmatprep.subr.mxu0 0.0
    %3240 = vmatpush1.msra.mxu0 %v3128
    %3241 = vmatprep.subr.mxu0 0.0
    %3242 = vmatpush1.msra.mxu0 %v3129
    %3243 = vmatprep.subr.mxu0 0.0
    %3244 = vmatpush1.msra.mxu0 %v3130
    %3245 = vmatprep.subr.mxu0 0.0
    %3246 = vmatpush1.msra.mxu0 %v3131
    %3247 = vmatprep.subr.mxu0 0.0
    %3248 = vmatpush1.msra.mxu0 %v3132
    %3249 = vmatprep.subr.mxu0 0.0
    %3250 = vmatpush1.msra.mxu0 %v3133
    %3251 = vmatprep.subr.mxu0 0.0
    %3252 = vmatpush1.msra.mxu0 %v3134
    %3253 = vmatprep.subr.mxu0 0.0
    %3254 = vmatpush1.msra.mxu0 %v3135
    %3255 = vmatprep.subr.mxu0 0.0
    %3256 = vmatpush1.msra.mxu0 %v3136
    %3257 = vmatprep.subr.mxu0 0.0
    %3258 = vmatpush1.msra.mxu0 %v3137
    %3259 = vmatprep.subr.mxu0 0.0
    %3260 = vmatpush1.msra.mxu0 %v3138
    %3261 = vmatprep.subr.mxu0 0.0
    %3262 = vmatpush1.msra.mxu0 %v3139
    %3263 = vmatprep.subr.mxu0 0.0
    %3264 = vmatpush1.msra.mxu0 %v3140
    %3265 = vmatprep.subr.mxu0 0.0
    %3266 = vmatpush1.msra.mxu0 %v3141
    %3267 = vmatprep.subr.mxu0 0.0
    %3268 = vmatpush1.msra.mxu0 %v3142
    %3269 = vmatprep.subr.mxu0 0.0
    %3270 = vmatpush1.msra.mxu0 %v3143
    %3271 = vmatprep.subr.mxu0 0.0
    %3272 = vmatpush1.msra.mxu0 %v3144
    %3273 = vmatprep.subr.mxu0 0.0
    %3274 = vmatpush1.msra.mxu0 %v3145
    %3275 = vmatprep.subr.mxu0 0.0
    %3276 = vmatpush1.msra.mxu0 %v3146
    %3277 = vmatprep.subr.mxu0 0.0
    %3278 = vmatpush1.msra.mxu0 %v3147
    %3279 = vmatprep.subr.mxu0 0.0
    %3280 = vmatpush1.msra.mxu0 %v3148
    %3281 = vmatprep.subr.mxu0 0.0
    %3282 = vmatpush1.msra.mxu0 %v3149
    %3283 = vmatprep.subr.mxu0 0.0
    %3284 = vmatpush1.msra.mxu0 %v3150
    %3285 = vmatprep.subr.mxu0 0.0
    %3286 = vmatpush1.msra.mxu0 %v3151
    %3287 = vmatprep.mubr.f32.mxu0 %v3073
    %3288 = vmatmul.mubr.f32.gmra.mrb[0].mxu0 %v3067
    %v3289 = vpop.f32.mrb[0].mxu0
    %v3290 = vadd.f32 %v3221, %v3289
    %v3291 = vpop.f32.mrb[0].mxu0
    %3292 = vdwg.mxu0
    %3293 = vmatprep.subr.mxu0 0.0
    %3294 = vmatpush1.msra.mxu0 %v3152
    %3295 = vmatprep.subr.mxu0 0.0
    %3296 = vmatpush1.msra.mxu0 %v3153
    %3297 = vmatprep.subr.mxu0 0.0
    %3298 = vmatpush1.msra.mxu0 %v3154
    %3299 = vmatprep.subr.mxu0 0.0
    %3300 = vmatpush1.msra.mxu0 %v3155
    %3301 = vmatprep.subr.mxu0 0.0
    %3302 = vmatpush1.msra.mxu0 %v3156
    %3303 = vmatprep.subr.mxu0 0.0
    %3304 = vmatpush1.msra.mxu0 %v3157
    %3305 = vmatprep.subr.mxu0 0.0
    %3306 = vmatpush1.msra.mxu0 %v3158
    %3307 = vmatprep.subr.mxu0 0.0
    %3308 = vmatpush1.msra.mxu0 %v3159
    %3309 = vmatprep.subr.mxu0 0.0
    %3310 = vmatpush1.msra.mxu0 %v3160
    %3311 = vmatprep.subr.mxu0 0.0
    %3312 = vmatpush1.msra.mxu0 %v3161
    %3313 = vmatprep.subr.mxu0 0.0
    %3314 = vmatpush1.msra.mxu0 %v3162
    %3315 = vmatprep.subr.mxu0 0.0
    %3316 = vmatpush1.msra.mxu0 %v3163
    %3317 = vmatprep.subr.mxu0 0.0
    %3318 = vmatpush1.msra.mxu0 %v3164
    %3319 = vmatprep.subr.mxu0 0.0
    %3320 = vmatpush1.msra.mxu0 %v3165
    %3321 = vmatprep.subr.mxu0 0.0
    %3322 = vmatpush1.msra.mxu0 %v3166
    %3323 = vmatprep.subr.mxu0 0.0
    %3324 = vmatpush1.msra.mxu0 %v3167
    %3325 = vmatprep.subr.mxu0 0.0
    %3326 = vmatpush1.msra.mxu0 %v3168
    %3327 = vmatprep.subr.mxu0 0.0
    %3328 = vmatpush1.msra.mxu0 %v3169
    %3329 = vmatprep.subr.mxu0 0.0
    %3330 = vmatpush1.msra.mxu0 %v3170
    %3331 = vmatprep.subr.mxu0 0.0
    %3332 = vmatpush1.msra.mxu0 %v3171
    %3333 = vmatprep.subr.mxu0 0.0
    %3334 = vmatpush1.msra.mxu0 %v3172
    %3335 = vmatprep.subr.mxu0 0.0
    %3336 = vmatpush1.msra.mxu0 %v3173
    %3337 = vmatprep.subr.mxu0 0.0
    %3338 = vmatpush1.msra.mxu0 %v3174
    %3339 = vmatprep.subr.mxu0 0.0
    %3340 = vmatpush1.msra.mxu0 %v3175
    %3341 = vmatprep.subr.mxu0 0.0
    %3342 = vmatpush1.msra.mxu0 %v3176
    %3343 = vmatprep.subr.mxu0 0.0
    %3344 = vmatpush1.msra.mxu0 %v3177
    %3345 = vmatprep.subr.mxu0 0.0
    %3346 = vmatpush1.msra.mxu0 %v3178
    %3347 = vmatprep.subr.mxu0 0.0
    %3348 = vmatpush1.msra.mxu0 %v3179
    %3349 = vmatprep.subr.mxu0 0.0
    %3350 = vmatpush1.msra.mxu0 %v3180
    %3351 = vmatprep.subr.mxu0 0.0
    %3352 = vmatpush1.msra.mxu0 %v3181
    %3353 = vmatprep.subr.mxu0 0.0
    %3354 = vmatpush1.msra.mxu0 %v3182
    %3355 = vmatprep.subr.mxu0 0.0
    %3356 = vmatpush1.msra.mxu0 %v3183
    %3357 = vmatprep.mubr.f32.mxu0 %v3095
    %3358 = vmatmul.mubr.f32.gmra.mrb[0].mxu0 %v3089
    %v3359 = vpop.f32.mrb[0].mxu0
    %v3360 = vadd.f32 %v3290, %v3359
    %v3361 = vpop.f32.mrb[0].mxu0
    %3362 = vdwg.mxu0
    %3363 = vmatprep.subr.mxu0 0.0
    %3364 = vmatpush1.msra.mxu0 %v3184
    %3365 = vmatprep.subr.mxu0 0.0
    %3366 = vmatpush1.msra.mxu0 %v3185
    %3367 = vmatprep.subr.mxu0 0.0
    %3368 = vmatpush1.msra.mxu0 %v3186
    %3369 = vmatprep.subr.mxu0 0.0
    %3370 = vmatpush1.msra.mxu0 %v3187
    %3371 = vmatprep.subr.mxu0 0.0
    %3372 = vmatpush1.msra.mxu0 %v3188
    %3373 = vmatprep.subr.mxu0 0.0
    %3374 = vmatpush1.msra.mxu0 %v3189
    %3375 = vmatprep.subr.mxu0 0.0
    %3376 = vmatpush1.msra.mxu0 %v3190
    %3377 = vmatprep.subr.mxu0 0.0
    %3378 = vmatpush1.msra.mxu0 %v3191
    %3379 = vmatprep.subr.mxu0 0.0
    %3380 = vmatpush1.msra.mxu0 %v3192
    %3381 = vmatprep.subr.mxu0 0.0
    %3382 = vmatpush1.msra.mxu0 %v3193
    %3383 = vmatprep.subr.mxu0 0.0
    %3384 = vmatpush1.msra.mxu0 %v3194
    %3385 = vmatprep.subr.mxu0 0.0
    %3386 = vmatpush1.msra.mxu0 %v3195
    %3387 = vmatprep.subr.mxu0 0.0
    %3388 = vmatpush1.msra.mxu0 %v3196
    %3389 = vmatprep.subr.mxu0 0.0
    %3390 = vmatpush1.msra.mxu0 %v3197
    %3391 = vmatprep.subr.mxu0 0.0
    %3392 = vmatpush1.msra.mxu0 %v3198
    %3393 = vmatprep.subr.mxu0 0.0
    %3394 = vmatpush1.msra.mxu0 %v3199
    %3395 = vmatprep.subr.mxu0 0.0
    %3396 = vmatpush1.msra.mxu0 %v3200
    %3397 = vmatprep.subr.mxu0 0.0
    %3398 = vmatpush1.msra.mxu0 %v3201
    %3399 = vmatprep.subr.mxu0 0.0
    %3400 = vmatpush1.msra.mxu0 %v3202
    %3401 = vmatprep.subr.mxu0 0.0
    %3402 = vmatpush1.msra.mxu0 %v3203
    %3403 = vmatprep.subr.mxu0 0.0
    %3404 = vmatpush1.msra.mxu0 %v3204
    %3405 = vmatprep.subr.mxu0 0.0
    %3406 = vmatpush1.msra.mxu0 %v3205
    %3407 = vmatprep.subr.mxu0 0.0
    %3408 = vmatpush1.msra.mxu0 %v3206
    %3409 = vmatprep.subr.mxu0 0.0
    %3410 = vmatpush1.msra.mxu0 %v3207
    %3411 = vmatprep.subr.mxu0 0.0
    %3412 = vmatpush1.msra.mxu0 %v3208
    %3413 = vmatprep.subr.mxu0 0.0
    %3414 = vmatpush1.msra.mxu0 %v3209
    %3415 = vmatprep.subr.mxu0 0.0
    %3416 = vmatpush1.msra.mxu0 %v3210
    %3417 = vmatprep.subr.mxu0 0.0
    %3418 = vmatpush1.msra.mxu0 %v3211
    %3419 = vmatprep.subr.mxu0 0.0
    %3420 = vmatpush1.msra.mxu0 %v3212
    %3421 = vmatprep.subr.mxu0 0.0
    %3422 = vmatpush1.msra.mxu0 %v3213
    %3423 = vmatprep.subr.mxu0 0.0
    %3424 = vmatpush1.msra.mxu0 %v3214
    %3425 = vmatprep.subr.mxu0 0.0
    %3426 = vmatpush1.msra.mxu0 %v3215
    %3427 = vmatprep.mubr.f32.mxu0 %v3117
    %3428 = vmatmul.mubr.f32.gmra.mrb[0].mxu0 %v3111
    %v3429 = vpop.f32.mrb[0].mxu0
    %v3430 = vadd.f32 %v3360, %v3429
    %v3431 = vpop.f32.mrb[0].mxu0
    %3432 = vdwg.mxu0
    %3433 = vst [vmem:[#allocation8] sm:$0xf] %v3430
    // Predicated region
    $region34: #{tpu_custom_call.1} parent=1 // pred_check
      _
    $region35: #{tpu_custom_call.1} parent=1 // pred_check_branch
      %3435 = sbr.rel (0) target = $region37
    $region36: #{tpu_custom_call.1} parent=1 // pred_region
      %s3437 = ssub.s32 64, 64
      %3438 = vsyncadd [#allocation4], %s3437
      %s3440 = sshll.u32 [#allocation8], 4
      %s3441 = int_to_ptr.vmem [resolvable:$true] %s3440
      %3443 = dma.vmem_to_hbm [thread:$0]  %s3441, 64, %s5, [#allocation4]
    $region37: #{tpu_custom_call.1} parent=1 // pred_fallthru
      _
    // Predicated region
    $region38: #{tpu_custom_call.1} parent=1 // pred_check
      _
    $region39: #{tpu_custom_call.1} parent=1 // pred_check_branch
      %3445 = sbr.rel (0) target = $region41
    $region40: #{tpu_custom_call.1} parent=1 // pred_region
      %3446 = dma.done [#allocation4], 64
    $region41: #{tpu_custom_call.1} parent=1 // pred_fallthru
      _
    %3447 = vsyncpa [#allocation3], 1
    %3448 = vsyncpa [#allocation6], 1
    %3449 = vsyncpa [#allocation4], 1

</llo_original>
